<compile_context>
chip_gen: v7x
topology: tpu7x:2x2x1
jax: 0.10.0
libtpu: 0.0.40
codegen_flags: <defaults>
</compile_context>

<pallas_src>
import functools
import math

import jax
import jax.numpy as jnp
from jax.experimental import pallas as pl
from jax.experimental.pallas import tpu as pltpu


def _round_up(x, m):
    return ((x + m - 1) // m) * m


# ----------------------------------------------------------------------------
# Fused Pallas kernel
#   grid = (n_layers, n_row_tiles)   (layer axis outer / sequential)
#   scratch: h_ref (N_pad, F_pad) f32   -- resident activations
#            s_ref (N_pad, F_pad) bf16  -- support = h @ W_l (cast once/layer)
#            dma_sem                     -- one-time x -> h DMA
# ----------------------------------------------------------------------------
def _fused_gcn_kernel(x_hbm, adj_ref, w_ref, b_ref, o_ref,
                      h_ref, s_ref, dma_sem, *, row_tile, nclass, n_layers):
    l = pl.program_id(0)            # layer index
    r = pl.program_id(1)            # row-tile index
    is_first = l == 0
    is_last = l == n_layers - 1

    # Very first grid step: DMA x (HBM) -> h (VMEM).  No pipelined x buffer.
    @pl.when(jnp.logical_and(is_first, r == 0))
    def _():
        cp = pltpu.make_async_copy(x_hbm, h_ref, dma_sem)
        cp.start()
        cp.wait()

    # Once per layer (r == 0): support = h @ W_l (bf16 MXU, f32 accumulate),
    # stored bf16 so every row tile feeds the MXU directly without re-casting.
    @pl.when(r == 0)
    def _():
        s_ref[...] = jnp.dot(
            h_ref[...].astype(jnp.bfloat16), w_ref[...],
            preferred_element_type=jnp.float32).astype(jnp.bfloat16)

    # Per row tile: pre-activation = adj[tile, :] @ support + b  (f32 acc).
    pre = jnp.dot(adj_ref[...], s_ref[...],
                  preferred_element_type=jnp.float32) + b_ref[...]

    row0 = pl.multiple_of(r * row_tile, row_tile)

    # Input layer: relu, no residual.
    @pl.when(is_first)
    def _():
        h_ref[pl.ds(row0, row_tile), :] = jnp.maximum(pre, 0.0)

    # Hidden residual layers: relu then flat residual add (post-activation).
    @pl.when(jnp.logical_and(l > 0, jnp.logical_not(is_last)))
    def _():
        h_old = h_ref[pl.ds(row0, row_tile), :]
        h_ref[pl.ds(row0, row_tile), :] = jnp.maximum(pre, 0.0) + h_old

    # Output layer: fused lane-masked log_softmax; only layer that writes o.
    @pl.when(is_last)
    def _():
        col = jax.lax.broadcasted_iota(jnp.int32, pre.shape, 1)
        logits = jnp.where(col < nclass, pre, jnp.float32(-1e30))
        m = jnp.max(logits, axis=1, keepdims=True)
        z = logits - m
        lse = jnp.log(jnp.sum(jnp.exp(z), axis=1, keepdims=True))
        o_ref[...] = (z - lse).astype(o_ref.dtype)


# ----------------------------------------------------------------------------
# Wrapper: padding, weight stacking, pallas_call
# ----------------------------------------------------------------------------
def gcn_flat_res_forward(params, x, adj, *, row_tile=256):
    n, nfeat = x.shape
    nhid = params["in"][0].shape[1]
    nclass = params["out"][0].shape[1]
    n_layers = 2 + len(params["res"])

    f_pad = _round_up(max(nfeat, nhid, nclass), 128)   # lane-dense feature dim
    n_pad = _round_up(n, row_tile)                     # row tiling of adj
    n_row_tiles = n_pad // row_tile

    # Pad inputs (zero rows/cols never influence real rows: adj pad is zero).
    x_p = jnp.zeros((n_pad, f_pad), jnp.float32).at[:n, :nfeat].set(x)
    adj_p = (jnp.zeros((n_pad, n_pad), jnp.float32)
             .at[:n, :n].set(adj)).astype(jnp.bfloat16)

    # Stack all layer weights into (L, F_pad, F_pad) bf16 / (L, 1, F_pad) f32.
    layers = [params["in"]] + list(params["res"]) + [params["out"]]
    w_stack = jnp.zeros((n_layers, f_pad, f_pad), jnp.float32)
    b_stack = jnp.zeros((n_layers, 1, f_pad), jnp.float32)
    for i, (w, b) in enumerate(layers):
        fi, fo = w.shape
        w_stack = w_stack.at[i, :fi, :fo].set(w)
        b_stack = b_stack.at[i, 0, :fo].set(b)
    w_stack = w_stack.astype(jnp.bfloat16)             # pre-cast: bf16 MXU operand

    kernel = functools.partial(_fused_gcn_kernel, row_tile=row_tile,
                               nclass=nclass, n_layers=n_layers)

    # Output index map: park every non-final layer on block 0 so only the final
    # layer's blocks produce real HBM writebacks.
    def out_map(l, r):
        return (jnp.where(l == n_layers - 1, r, 0), 0)

    out_p = pl.pallas_call(
        kernel,
        out_shape=jax.ShapeDtypeStruct((n_pad, f_pad), jnp.float32),
        grid_spec=pltpu.PrefetchScalarGridSpec(
            num_scalar_prefetch=0,
            grid=(n_layers, n_row_tiles),
            in_specs=[
                pl.BlockSpec(memory_space=pl.ANY),                           # x (HBM, one-time DMA)
                pl.BlockSpec((row_tile, n_pad), lambda l, r: (r, 0)),        # adj row tile (bf16 stream)
                pl.BlockSpec((None, f_pad, f_pad), lambda l, r: (l, 0, 0)),  # W_l (bf16)
                pl.BlockSpec((None, 1, f_pad), lambda l, r: (l, 0, 0)),      # b_l (f32)
            ],
            out_specs=pl.BlockSpec((row_tile, f_pad), out_map),
            scratch_shapes=[
                pltpu.VMEM((n_pad, f_pad), jnp.float32),    # h (activations, carried)
                pltpu.VMEM((n_pad, f_pad), jnp.bfloat16),   # support = h @ W_l (bf16)
                pltpu.SemaphoreType.DMA(()),                # one-time x -> h copy
            ],
        ),
        compiler_params=pltpu.CompilerParams(
            dimension_semantics=("arbitrary", "arbitrary"),
            vmem_limit_bytes=48 * 1024 * 1024,
        ),
    )(x_p, adj_p, w_stack, b_stack)

    return out_p[:n, :nclass]


# ----------------------------------------------------------------------------
# Parameter init (legacy GraphConvolution.reset_parameters style:
#   uniform(-1/sqrt(out_features), 1/sqrt(out_features)) for W and b)
# ----------------------------------------------------------------------------
def _init_gc(key, fin, fout):
    stdv = 1.0 / math.sqrt(fout)
    kw, kb = jax.random.split(key)
    w = jax.random.uniform(kw, (fin, fout), jnp.float32, -stdv, stdv)
    b = jax.random.uniform(kb, (fout,), jnp.float32, -stdv, stdv)
    return w, b


def init_params(key, nfeat, nhid, nclass, nreslayer):
    keys = jax.random.split(key, 2 + nreslayer)
    return {
        "in": _init_gc(keys[0], nfeat, nhid),
        "res": [_init_gc(keys[1 + i], nhid, nhid) for i in range(nreslayer)],
        "out": _init_gc(keys[1 + nreslayer], nfeat if False else nhid, nclass),
    }


# ----------------------------------------------------------------------------
# Pure-JAX reference (mirrors the kernel's bf16-matmul / f32-accumulate math)
# ----------------------------------------------------------------------------
def _mm_bf16(a, b):
    return jnp.dot(a.astype(jnp.bfloat16), b.astype(jnp.bfloat16),
                   preferred_element_type=jnp.float32)


def reference_forward(params, x, adj):
    adj = adj.astype(jnp.bfloat16)
    w, b = params["in"]
    h = jnp.maximum(_mm_bf16(adj, _mm_bf16(x, w)) + b, 0.0)
    # dropout(training=False) -> identity
    for w, b in params["res"]:
        h = jnp.maximum(_mm_bf16(adj, _mm_bf16(h, w)) + b, 0.0) + h
    w, b = params["out"]
    logits = _mm_bf16(adj, _mm_bf16(h, w)) + b
    return jax.nn.log_softmax(logits, axis=1)


# ----------------------------------------------------------------------------
# Demo
# ----------------------------------------------------------------------------
if __name__ == "__main__":
    N, NFEAT, NHID, NCLASS, NRESLAYER = 300, 32, 32, 8, 2

    key = jax.random.PRNGKey(0)
    k_x, k_adj, k_p = jax.random.split(key, 3)

    # Node features
    x = jax.random.normal(k_x, (N, NFEAT), dtype=jnp.float32)

    # Deterministic random graph -> symmetric adjacency with self-loops,
    # D^{-1/2} A D^{-1/2} normalization (standard GCN preprocessing).
    u = jax.random.uniform(k_adj, (N, N))
    a = ((u + u.T) > 1.3).astype(jnp.float32)
    a = jnp.minimum(a + jnp.eye(N, dtype=jnp.float32), 1.0)
    d_inv_sqrt = 1.0 / jnp.sqrt(jnp.sum(a, axis=1))
    adj = a * d_inv_sqrt[:, None] * d_inv_sqrt[None, :]

    params = init_params(k_p, NFEAT, NHID, NCLASS, NRESLAYER)

    out = gcn_flat_res_forward(params, x, adj)
    out = jax.block_until_ready(out)

    assert out.shape == (N, NCLASS)
    assert bool(jnp.all(jnp.isfinite(out)))
    # rows of log_softmax must exp-sum to 1
    assert bool(jnp.allclose(jnp.sum(jnp.exp(out), axis=1), 1.0, atol=1e-3))
    # match the pure-JAX reference (bf16 matmuls, f32 accumulate)
    ref = reference_forward(params, x, adj)
    assert bool(jnp.allclose(out, ref, atol=2e-2, rtol=2e-2)), \
        float(jnp.max(jnp.abs(out - ref)))

    print("KERNEL_OK")
</pallas_src>

<mosaic_0001>
module attributes {stable_mosaic.version = 11 : i64} {
  func.func @_fused_gcn_kernel(%arg0: i32, %arg1: i32, %arg2: memref<512x128xf32, #tpu.memory_space<any>>, %arg3: memref<256x512xbf16, #tpu.memory_space<vmem>>, %arg4: memref<1x128x128xbf16, #tpu.memory_space<vmem>>, %arg5: memref<1x1x128xf32, #tpu.memory_space<vmem>>, %arg6: memref<256x128xf32, #tpu.memory_space<vmem>>, %arg7: memref<512x128xf32, #tpu.memory_space<vmem>>, %arg8: memref<512x128xbf16, #tpu.memory_space<vmem>>, %arg9: memref<!tpu.dma_semaphore, #tpu.memory_space<semaphore_mem>>) attributes {dimension_semantics = [#tpu.dimension_semantics<arbitrary>, #tpu.dimension_semantics<arbitrary>], iteration_bounds = array<i64: 4, 2>, scalar_prefetch = 0 : i64, scratch_operands = 3 : i64, tpu.core_type = #tpu.core_type<tc>, window_params = [{}, {transform_indices = @transform_1, window_bounds = array<i64: 256, 512>}, {transform_indices = @transform_2, window_bounds = array<i64: 1, 128, 128>}, {transform_indices = @transform_3, window_bounds = array<i64: 1, 1, 128>}, {transform_indices = @transform_4, window_bounds = array<i64: 256, 128>}]} {
    %c0_i32 = arith.constant 0 : i32
    %0 = arith.cmpi eq, %arg0, %c0_i32 : i32
    %c3_i32 = arith.constant 3 : i32
    %1 = arith.cmpi eq, %arg0, %c3_i32 : i32
    %c0_i32_0 = arith.constant 0 : i32
    %2 = arith.cmpi eq, %arg1, %c0_i32_0 : i32
    %3 = arith.andi %0, %2 : i1
    %4 = arith.extui %3 : i1 to i32
    %c0_i32_1 = arith.constant 0 : i32
    %5 = arith.cmpi ne, %4, %c0_i32_1 : i32
    scf.if %5 {
      tpu.enqueue_dma source(%arg2 : memref<512x128xf32, #tpu.memory_space<any>>) target(%arg7 : memref<512x128xf32, #tpu.memory_space<vmem>>) target_semaphore(%arg9 : memref<!tpu.dma_semaphore, #tpu.memory_space<semaphore_mem>>)
      tpu.wait_dma2 semaphore(%arg9 : memref<!tpu.dma_semaphore, #tpu.memory_space<semaphore_mem>>) src(%arg2 : memref<512x128xf32, #tpu.memory_space<any>>) dst(%arg7 : memref<512x128xf32, #tpu.memory_space<vmem>>)
    } else {
    }
    %c0_i32_2 = arith.constant 0 : i32
    %6 = arith.cmpi eq, %arg1, %c0_i32_2 : i32
    %7 = arith.extui %6 : i1 to i32
    %c0_i32_3 = arith.constant 0 : i32
    %8 = arith.cmpi ne, %7, %c0_i32_3 : i32
    scf.if %8 {
      %c0_14 = arith.constant 0 : index
      %c0_15 = arith.constant 0 : index
      %27 = vector.load %arg7[%c0_14, %c0_15] : memref<512x128xf32, #tpu.memory_space<vmem>>, vector<512x128xf32>
      %28 = arith.truncf %27 : vector<512x128xf32> to vector<512x128xbf16>
      %c0_16 = arith.constant 0 : index
      %c0_17 = arith.constant 0 : index
      %c0_18 = arith.constant 0 : index
      %29 = vector.load %arg4[%c0_16, %c0_17, %c0_18] : memref<1x128x128xbf16, #tpu.memory_space<vmem>>, vector<1x128x128xbf16>
      %30 = vector.shape_cast %29 : vector<1x128x128xbf16> to vector<128x128xbf16>
      %cst_19 = arith.constant dense<0.000000e+00> : vector<512x128xf32>
      %31 = tpu.matmul %28, %30, %cst_19 {dimension_numbers = #tpu.dot_dimension_numbers<[1], [0], [0], [1], [0, 0, 1, 1], [], []>} : vector<512x128xbf16>, vector<128x128xbf16>, vector<512x128xf32> -> vector<512x128xf32>
      %32 = arith.truncf %31 : vector<512x128xf32> to vector<512x128xbf16>
      %c0_20 = arith.constant 0 : index
      %c0_21 = arith.constant 0 : index
      %33 = vector.load %arg8[%c0_20, %c0_21] : memref<512x128xbf16, #tpu.memory_space<vmem>>, vector<512x128xbf16>
      tpu.vector_store %arg8[%c0_20, %c0_21], %32 {strides = array<i32>} : memref<512x128xbf16, #tpu.memory_space<vmem>>, vector<512x128xbf16>,
    } else {
    }
    %c0 = arith.constant 0 : index
    %c0_4 = arith.constant 0 : index
    %9 = vector.load %arg3[%c0, %c0_4] : memref<256x512xbf16, #tpu.memory_space<vmem>>, vector<256x512xbf16>
    %c0_5 = arith.constant 0 : index
    %c0_6 = arith.constant 0 : index
    %10 = vector.load %arg8[%c0_5, %c0_6] : memref<512x128xbf16, #tpu.memory_space<vmem>>, vector<512x128xbf16>
    %cst = arith.constant dense<0.000000e+00> : vector<256x128xf32>
    %11 = tpu.matmul %9, %10, %cst {dimension_numbers = #tpu.dot_dimension_numbers<[1], [0], [0], [1], [0, 0, 1, 1], [], []>} : vector<256x512xbf16>, vector<512x128xbf16>, vector<256x128xf32> -> vector<256x128xf32>
    %c0_7 = arith.constant 0 : index
    %c0_8 = arith.constant 0 : index
    %c0_9 = arith.constant 0 : index
    %12 = vector.load %arg5[%c0_7, %c0_8, %c0_9] : memref<1x1x128xf32, #tpu.memory_space<vmem>>, vector<1x1x128xf32>
    %13 = vector.shape_cast %12 : vector<1x1x128xf32> to vector<1x128xf32>
    %14 = vector.broadcast %13 : vector<1x128xf32> to vector<256x128xf32>
    %15 = arith.addf %11, %14 : vector<256x128xf32>
    %c256_i32 = arith.constant 256 : i32
    %16 = arith.muli %arg1, %c256_i32 : i32
    %17 = tpu.assume_multiple %16, 256 : i32
    %18 = arith.extui %0 : i1 to i32
    %c0_i32_10 = arith.constant 0 : i32
    %19 = arith.cmpi ne, %18, %c0_i32_10 : i32
    scf.if %19 {
      %cst_14 = arith.constant 0.000000e+00 : f32
      %27 = vector.broadcast %cst_14 : f32 to vector<256x128xf32>
      %28 = arith.maximumf %15, %27 : vector<256x128xf32>
      %29 = arith.index_cast %17 : i32 to index
      %c0_15 = arith.constant 0 : index
      %30 = vector.load %arg7[%29, %c0_15] : memref<512x128xf32, #tpu.memory_space<vmem>>, vector<256x128xf32>
      tpu.vector_store %arg7[%29, %c0_15], %28 {strides = array<i32>} : memref<512x128xf32, #tpu.memory_space<vmem>>, vector<256x128xf32>,
    } else {
    }
    %c0_i32_11 = arith.constant 0 : i32
    %20 = arith.cmpi sgt, %arg0, %c0_i32_11 : i32
    %true = arith.constant true
    %21 = arith.xori %1, %true : i1
    %22 = arith.andi %20, %21 : i1
    %23 = arith.extui %22 : i1 to i32
    %c0_i32_12 = arith.constant 0 : i32
    %24 = arith.cmpi ne, %23, %c0_i32_12 : i32
    scf.if %24 {
      %27 = arith.index_cast %17 : i32 to index
      %c0_14 = arith.constant 0 : index
      %28 = vector.load %arg7[%27, %c0_14] : memref<512x128xf32, #tpu.memory_space<vmem>>, vector<256x128xf32>
      %cst_15 = arith.constant 0.000000e+00 : f32
      %29 = vector.broadcast %cst_15 : f32 to vector<256x128xf32>
      %30 = arith.maximumf %15, %29 : vector<256x128xf32>
      %31 = arith.addf %30, %28 : vector<256x128xf32>
      %32 = arith.index_cast %17 : i32 to index
      %c0_16 = arith.constant 0 : index
      %33 = vector.load %arg7[%32, %c0_16] : memref<512x128xf32, #tpu.memory_space<vmem>>, vector<256x128xf32>
      tpu.vector_store %arg7[%32, %c0_16], %31 {strides = array<i32>} : memref<512x128xf32, #tpu.memory_space<vmem>>, vector<256x128xf32>,
    } else {
    }
    %25 = arith.extui %1 : i1 to i32
    %c0_i32_13 = arith.constant 0 : i32
    %26 = arith.cmpi ne, %25, %c0_i32_13 : i32
    scf.if %26 {
      %27 = tpu.iota {dimensions = array<i32: 1>} : vector<256x128xi32>
      %c8_i32 = arith.constant 8 : i32
      %28 = vector.broadcast %c8_i32 : i32 to vector<256x128xi32>
      %29 = arith.cmpi slt, %27, %28 : vector<256x128xi32>
      %cst_14 = arith.constant -1.000000e+30 : f32
      %30 = vector.broadcast %cst_14 : f32 to vector<256x128xf32>
      %31 = arith.select %29, %15, %30 : vector<256x128xi1>, vector<256x128xf32>
      %cst_15 = arith.constant dense<0xFF800000> : vector<256xf32>
      %32 = vector.multi_reduction <maximumf>, %31, %cst_15 [1] : vector<256x128xf32> to vector<256xf32>
      %33 = vector.shape_cast %32 : vector<256xf32> to vector<256x1xf32>
      %34 = vector.broadcast %33 : vector<256x1xf32> to vector<256x128xf32>
      %35 = arith.subf %31, %34 : vector<256x128xf32>
      %36 = math.exp %35 : vector<256x128xf32>
      %cst_16 = arith.constant dense<0.000000e+00> : vector<256xf32>
      %37 = vector.multi_reduction <add>, %36, %cst_16 [1] : vector<256x128xf32> to vector<256xf32>
      %38 = vector.shape_cast %37 : vector<256xf32> to vector<256x1xf32>
      %39 = math.log %38 : vector<256x1xf32>
      %40 = vector.broadcast %39 : vector<256x1xf32> to vector<256x128xf32>
      %41 = arith.subf %35, %40 : vector<256x128xf32>
      %c0_17 = arith.constant 0 : index
      %c0_18 = arith.constant 0 : index
      %42 = vector.load %arg6[%c0_17, %c0_18] : memref<256x128xf32, #tpu.memory_space<vmem>>, vector<256x128xf32>
      tpu.vector_store %arg6[%c0_17, %c0_18], %41 {strides = array<i32>} : memref<256x128xf32, #tpu.memory_space<vmem>>, vector<256x128xf32>,
    } else {
    }
    return
  }
  func.func @transform_1(%arg0: i32, %arg1: i32) -> (i32, i32) {
    %c0_i32 = arith.constant 0 : i32
    %c0_i32_0 = arith.constant 0 : i32
    return %arg1, %c0_i32 : i32, i32
  }
  func.func @transform_2(%arg0: i32, %arg1: i32) -> (i32, i32, i32) {
    %c0_i32 = arith.constant 0 : i32
    %c0_i32_0 = arith.constant 0 : i32
    %c0_i32_1 = arith.constant 0 : i32
    return %arg0, %c0_i32, %c0_i32_0 : i32, i32, i32
  }
  func.func @transform_3(%arg0: i32, %arg1: i32) -> (i32, i32, i32) {
    %c0_i32 = arith.constant 0 : i32
    %c0_i32_0 = arith.constant 0 : i32
    %c0_i32_1 = arith.constant 0 : i32
    return %arg0, %c0_i32, %c0_i32_0 : i32, i32, i32
  }
  func.func @transform_4(%arg0: i32, %arg1: i32) -> (i32, i32) {
    %c3_i32 = arith.constant 3 : i32
    %0 = arith.cmpi eq, %arg0, %c3_i32 : i32
    %c0_i32 = arith.constant 0 : i32
    %1 = arith.select %0, %arg1, %c0_i32 : i32
    %c0_i32_0 = arith.constant 0 : i32
    %c0_i32_1 = arith.constant 0 : i32
    return %1, %c0_i32_0 : i32, i32
  }
}

</mosaic_0001>

<llo_original>
// kernel: tpu_custom_call.1
$region0: #{tpu_custom_call.1}
  #allocation0 [shape = 'u32[]', space=smem, size = 0x4, offset = 0x4, fixed_abs, tag = 'smem constant byte address 0x4 - core index']
  #allocation1 [shape = 'u32[144,128]{1,0:T(1,128)}', space=vmem, size = 0x12000, scoped, tag = 'internal scratch']
  #allocation2 [shape = 'f32[512,128]{1,0:T(8,128)}', space=vmem, size = 0x40000, scoped, tag = 'scratch operand']
  #allocation3 [shape = 'bf16[512,128]{1,0:T(16,128)(2,1)}', space=vmem, size = 0x20000, scoped, tag = 'scratch operand']
  #allocation4 [shape = 's32[1]{0}', space=sflag, size = 0x4, scoped, tag = 'scratch operand']
  #allocation11 [shape = 's32[]', space=sflag, size = 0x4, offset = 0, fixed_abs, tag = 'sflag constant byte address 0x0 - dummy sync flag']
  #allocation12 [shape = 's32[]', space=sflag, size = 0x4, offset = 0, fixed_abs, tag = 'sflag constant byte address 0x0 - dummy sync flag']
  #allocation13 [shape = 'u32[]', space=smem, size = 0x4, offset = 0x44, fixed_abs, tag = 'smem constant byte address 0x44 - assertion arg 0']
  #allocation14 [shape = 'u32[]', space=smem, size = 0x4, offset = 0x48, fixed_abs, tag = 'smem constant byte address 0x48 - assertion arg 1']
  %s0 = inlined_call_operand.hbm [shape: f32[512,128], index: 0, kind: input, shape index: {}]
  %s1 = inlined_call_operand.hbm [shape: bf16[512,512], index: 1, kind: input, shape index: {}]
  %s2 = inlined_call_operand.hbm [shape: bf16[4,128,128], index: 2, kind: input, shape index: {}]
  %s3 = inlined_call_operand.vmem [shape: f32[4,1,128], index: 3, kind: input, shape index: {}]
  %s4 = inlined_call_operand.hbm [shape: f32[512,128], index: 4, kind: output, shape index: {}]
  %s5 = sld [smem:[#allocation0]]
  $region77: #{tpu_custom_call.1} parent=0
    _
  %s7 = ssub.s32 1, %s5
  %s8 = scalar_select 0, %s7, %s5
  $region1: #{tpu_custom_call.1} parent=0
    #allocation5 [shape = 'u8[524288]{0}', space=vmem, size = 0x80000, scoped, tag = 'input window, operand 1']
    #allocation6 [shape = 's32[2]{0}', space=sflag, size = 0x8, scoped, tag = 'scoped memory for tpu_custom_call.1']
    #allocation7 [shape = 's32[2]{0}', space=sflag, size = 0x8, scoped, tag = 'scoped memory for tpu_custom_call.1']
    #allocation8 [shape = 'u8[65536]{0}', space=vmem, size = 0x10000, scoped, tag = 'input window, operand 2']
    #allocation9 [shape = 's32[2]{0}', space=sflag, size = 0x8, scoped, tag = 'scoped memory for tpu_custom_call.1']
    #allocation10 [shape = 'u8[262144]{0}', space=vmem, size = 0x40000, scoped, tag = 'output window, operand 0']
    %9 = vsyncpa [#allocation6], 0
    %s10 = scalar_lea.sflag [#allocation6], 1
    %11 = vsyncpa %s10, 0
    %12 = vsyncpa [#allocation9], 0
    %s13 = scalar_lea.sflag [#allocation9], 1
    %14 = vsyncpa %s13, 0
    %15 = vsyncpa [#allocation7], 0
    %s16 = scalar_lea.sflag [#allocation7], 1
    %17 = vsyncpa %s16, 0
    loop: start=0, step=1, limit=10
    $region2: #{tpu_custom_call.1} parent=1 // loop_pre_header
      _
    $region3: #{tpu_custom_call.1} parent=1 // loop_header
      %s19 = sphi 0, %s23
      %p20 = scmp.ge.s32.totalorder %s19, 10
      %s26 = sphi 0, %s38
      %s27 = sphi 0, %s34
      %s28 = sphi 0, %s26
      %s29 = sphi 0, %s27
      %s30 = sphi 0, %s28
      %s31 = sphi 0, %s29
      %s41 = sphi 0, %s43
      %s44 = sphi 0, %s41
      %s45 = sphi 0, %s44
      %s61 = sphi 0, %s45
      %s67 = sphi 0, %s69
      %s70 = sphi 0, %s67
      %s71 = sphi 0, %s70
      %s87 = sphi 0, %s71
      %s93 = sphi 0, %s95
      %s96 = sphi 0, %s93
      %s97 = sphi 0, %s96
      %s113 = sphi 0, %s97
      %s123 = sphi 0, %s125
      %s126 = sphi 0, %s123
      %s127 = sphi 0, %s126
      %s143 = sphi 0, %s127
    $region4: #{tpu_custom_call.1} parent=1 // loop_header_branch
      %22 = sbr.rel (%p20) target = $region8
    $region5: #{tpu_custom_call.1} parent=1 // loop_body
      %s24 = ssub.s32 %s19, 1
      %s25 = ssub.s32 %s19, 2
      %s32 = sadd.s32 1, %s27
      %p33 = scmp.ge.s32.totalorder %s32, 2
      %s34 = scalar_select %p33, 0, %s32
      %s35 = sadd.s32 1, %s26
      %s36 = scalar_select %p33, %s35, %s26
      %p37 = scmp.ge.s32.totalorder %s36, 4
      %s38 = scalar_select %p37, 0, %s36
      %s39 = ssub.s32 %s27, %s34
      %p40 = scmp.eq.s32.totalorder %s39, 0
      %s42 = sadd.s32 %s41, 1
      %s43 = scalar_select %p40, %s41, %s42
      %p46 = pneg %p40
      %p47 = scmp.eq.s32.totalorder %s19, 7
      %p48 = por %p46, %p47
      %p49 = scmp.ne.s32.totalorder %s41, %s44
      %p50 = scmp.eq.s32.totalorder %s19, 0
      %p51 = por %p49, %p50
      %p52 = scmp.ne.s32.totalorder %s41, %s44
      %p53 = scmp.eq.s32.totalorder %s24, 7
      %p54 = por %p52, %p53
      %p55 = scmp.ne.s32.totalorder %s44, %s45
      %p56 = scmp.eq.s32.totalorder %s24, 0
      %p57 = por %p55, %p56
      %p58 = scmp.ne.s32.totalorder %s44, %s45
      %p59 = scmp.eq.s32.totalorder %s25, 7
      %p60 = por %p58, %p59
      %p62 = scmp.ne.s32.totalorder %s45, %s61
      %p63 = scmp.eq.s32.totalorder %s25, 0
      %p64 = por %p62, %p63
      %s65 = ssub.s32 %s26, %s38
      %p66 = scmp.eq.s32.totalorder %s65, 0
      %s68 = sadd.s32 %s67, 1
      %s69 = scalar_select %p66, %s67, %s68
      %p72 = pneg %p66
      %p73 = scmp.eq.s32.totalorder %s19, 7
      %p74 = por %p72, %p73
      %p75 = scmp.ne.s32.totalorder %s67, %s70
      %p76 = scmp.eq.s32.totalorder %s19, 0
      %p77 = por %p75, %p76
      %p78 = scmp.ne.s32.totalorder %s67, %s70
      %p79 = scmp.eq.s32.totalorder %s24, 7
      %p80 = por %p78, %p79
      %p81 = scmp.ne.s32.totalorder %s70, %s71
      %p82 = scmp.eq.s32.totalorder %s24, 0
      %p83 = por %p81, %p82
      %p84 = scmp.ne.s32.totalorder %s70, %s71
      %p85 = scmp.eq.s32.totalorder %s25, 7
      %p86 = por %p84, %p85
      %p88 = scmp.ne.s32.totalorder %s71, %s87
      %p89 = scmp.eq.s32.totalorder %s25, 0
      %p90 = por %p88, %p89
      %s91 = ssub.s32 %s26, %s38
      %p92 = scmp.eq.s32.totalorder %s91, 0
      %s94 = sadd.s32 %s93, 1
      %s95 = scalar_select %p92, %s93, %s94
      %p98 = pneg %p92
      %p99 = scmp.eq.s32.totalorder %s19, 7
      %p100 = por %p98, %p99
      %p101 = scmp.ne.s32.totalorder %s93, %s96
      %p102 = scmp.eq.s32.totalorder %s19, 0
      %p103 = por %p101, %p102
      %p104 = scmp.ne.s32.totalorder %s93, %s96
      %p105 = scmp.eq.s32.totalorder %s24, 7
      %p106 = por %p104, %p105
      %p107 = scmp.ne.s32.totalorder %s96, %s97
      %p108 = scmp.eq.s32.totalorder %s24, 0
      %p109 = por %p107, %p108
      %p110 = scmp.ne.s32.totalorder %s96, %s97
      %p111 = scmp.eq.s32.totalorder %s25, 7
      %p112 = por %p110, %p111
      %p114 = scmp.ne.s32.totalorder %s97, %s113
      %p115 = scmp.eq.s32.totalorder %s25, 0
      %p116 = por %p114, %p115
      %p117 = scmp.eq.s32.totalorder %s26, 3
      %s118 = scalar_select %p117, %s27, 0
      %p119 = scmp.eq.s32.totalorder %s38, 3
      %s120 = scalar_select %p119, %s34, 0
      %s121 = ssub.s32 %s118, %s120
      %p122 = scmp.eq.s32.totalorder %s121, 0
      %s124 = sadd.s32 %s123, 1
      %s125 = scalar_select %p122, %s123, %s124
      %p128 = pneg %p122
      %p129 = scmp.eq.s32.totalorder %s19, 7
      %p130 = por %p128, %p129
      %p131 = scmp.ne.s32.totalorder %s123, %s126
      %p132 = scmp.eq.s32.totalorder %s19, 0
      %p133 = por %p131, %p132
      %p134 = scmp.ne.s32.totalorder %s123, %s126
      %p135 = scmp.eq.s32.totalorder %s24, 7
      %p136 = por %p134, %p135
      %p137 = scmp.ne.s32.totalorder %s126, %s127
      %p138 = scmp.eq.s32.totalorder %s24, 0
      %p139 = por %p137, %p138
      %p140 = scmp.ne.s32.totalorder %s126, %s127
      %p141 = scmp.eq.s32.totalorder %s25, 7
      %p142 = por %p140, %p141
      %p144 = scmp.ne.s32.totalorder %s127, %s143
      %p145 = scmp.eq.s32.totalorder %s25, 0
      %p146 = por %p144, %p145
      %p147 = scmp.le.s32.totalorder 1, %s19
      %p148 = scmp.lt.s32.totalorder %s19, 9
      %p149 = pnand %p147, %p148
      %p150 = pneg %p149
      // Predicated region
      $region9: #{tpu_custom_call.1} parent=5 // pred_check
        _
      $region10: #{tpu_custom_call.1} parent=5 // pred_check_branch
        %152 = sbr.rel (%p149) target = $region12
      $region11: #{tpu_custom_call.1} parent=5 // pred_region
        %s153 = ssub.s32 %s19, 1
      $region12: #{tpu_custom_call.1} parent=5 // pred_fallthru
        _
      %p154 = scmp.lt.s32.totalorder %s19, 8
      // Predicated region
      $region13: #{tpu_custom_call.1} parent=5 // pred_check
        %p155 = pneg %p154
      $region14: #{tpu_custom_call.1} parent=5 // pred_check_branch
        %157 = sbr.rel (%p155) target = $region16
      $region15: #{tpu_custom_call.1} parent=5 // pred_region
        // Predicated region
        $region17: #{tpu_custom_call.1} parent=15 // pred_check
          %p158 = pneg %p51
        $region18: #{tpu_custom_call.1} parent=15 // pred_check_branch
          %160 = sbr.rel (%p158) target = $region20
        $region19: #{tpu_custom_call.1} parent=15 // pred_region
          %s161 = sand.u32 %s41, 1
          %s162 = scalar_lea.sflag [#allocation6], %s161
          %s163 = sand.u32 %s41, 1
          %s164 = smul.addr %s163, 512
          %s165 = scalar_lea.vmem [#allocation5], %s164
          %s166 = smul.u32 32, %s27
          %s168 = ssub.s32 8192, 8192
          %169 = vsyncadd %s162, %s168
          %s170 = smul.addr %s166, 4
          %s171 = smul.addr %s170, 64
          %s172 = scalar_lea.hbm %s1, %s171
          %s173 = sshll.u32 %s165, 4
          %s174 = int_to_ptr.vmem [resolvable:$true] %s173
          %179 = dma.hbm_to_vmem [thread:$0]  %s172, 8192, %s174, %s162, 256, 256, 16
        $region20: #{tpu_custom_call.1} parent=15 // pred_fallthru
          _
        // Predicated region
        $region21: #{tpu_custom_call.1} parent=15 // pred_check
          %p180 = pneg %p77
        $region22: #{tpu_custom_call.1} parent=15 // pred_check_branch
          %182 = sbr.rel (%p180) target = $region24
        $region23: #{tpu_custom_call.1} parent=15 // pred_region
          %s183 = sand.u32 %s67, 1
          %s184 = scalar_lea.sflag [#allocation9], %s183
          %s185 = sand.u32 %s67, 1
          %s186 = smul.addr %s185, 64
          %s187 = scalar_lea.vmem [#allocation8], %s186
          %s189 = ssub.s32 1024, 1024
          %190 = vsyncadd %s184, %s189
          %s191 = smul.addr %s26, 16
          %s192 = smul.addr %s191, 64
          %s193 = scalar_lea.hbm %s2, %s192
          %s194 = sshll.u32 %s187, 4
          %s195 = int_to_ptr.vmem [resolvable:$true] %s194
          %200 = dma.hbm_to_vmem [thread:$0]  %s193, 1024, %s195, %s184, 64, 64, 4
        $region24: #{tpu_custom_call.1} parent=15 // pred_fallthru
          _
        // Predicated region
        $region25: #{tpu_custom_call.1} parent=15 // pred_check
          %p201 = pneg %p103
        $region26: #{tpu_custom_call.1} parent=15 // pred_check_branch
          %203 = sbr.rel (%p201) target = $region28
        $region27: #{tpu_custom_call.1} parent=15 // pred_region
          %p204 = scmp.lt.s32.totalorder %s26, 3
          %s205 = scalar_select %p204, %s26, 3
          %s206 = scalar_lea.vmem %s3, %s205
        $region28: #{tpu_custom_call.1} parent=15 // pred_fallthru
          _
      $region16: #{tpu_custom_call.1} parent=5 // pred_fallthru
        _
      %p207 = scmp.le.s32.totalorder 1, %s19
      %p208 = scmp.lt.s32.totalorder %s19, 9
      %p209 = pnand %p207, %p208
      %p210 = pneg %p209
      // Predicated region
      $region29: #{tpu_custom_call.1} parent=5 // pred_check
        _
      $region30: #{tpu_custom_call.1} parent=5 // pred_check_branch
        %212 = sbr.rel (%p209) target = $region32
      $region31: #{tpu_custom_call.1} parent=5 // pred_region
        %s213 = ssub.s32 %s19, 1
        %s214 = sand.u32 %s44, 1
        %s215 = scalar_lea.sflag [#allocation6], %s214
        %s216 = sand.u32 %s44, 1
        %s217 = smul.addr %s216, 512
        %s218 = scalar_lea.vmem [#allocation5], %s217
        // Predicated region
        $region33: #{tpu_custom_call.1} parent=31 // pred_check
          %p219 = pneg %p57
        $region34: #{tpu_custom_call.1} parent=31 // pred_check_branch
          %221 = sbr.rel (%p219) target = $region36
        $region35: #{tpu_custom_call.1} parent=31 // pred_region
          %222 = dma.done %s215, 8192
        $region36: #{tpu_custom_call.1} parent=31 // pred_fallthru
          _
        %s223 = sand.u32 %s70, 1
        %s224 = scalar_lea.sflag [#allocation9], %s223
        %s225 = sand.u32 %s70, 1
        %s226 = smul.addr %s225, 64
        %s227 = scalar_lea.vmem [#allocation8], %s226
        // Predicated region
        $region37: #{tpu_custom_call.1} parent=31 // pred_check
          %p228 = pneg %p83
        $region38: #{tpu_custom_call.1} parent=31 // pred_check_branch
          %230 = sbr.rel (%p228) target = $region40
        $region39: #{tpu_custom_call.1} parent=31 // pred_region
          %231 = dma.done %s224, 1024
        $region40: #{tpu_custom_call.1} parent=31 // pred_fallthru
          _
        %s232 = sand.u32 %s44, 1
        %s233 = scalar_lea.sflag [#allocation6], %s232
        %s234 = sand.u32 %s44, 1
        %s235 = smul.addr %s234, 512
        %s236 = scalar_lea.vmem [#allocation5], %s235
        %p237 = pneg %p57
        %p238 = pneg %p54
        %s239 = sand.u32 %s70, 1
        %s240 = scalar_lea.sflag [#allocation9], %s239
        %s241 = sand.u32 %s70, 1
        %s242 = smul.addr %s241, 64
        %s243 = scalar_lea.vmem [#allocation8], %s242
        %p244 = pneg %p83
        %p245 = pneg %p80
        %p246 = scmp.lt.s32.totalorder %s28, 3
        %s247 = scalar_select %p246, %s28, 3
        %s248 = scalar_lea.vmem %s3, %s247
        %p249 = pneg %p109
        %p250 = pneg %p106
        %p251 = pneg %p139
        %p252 = pneg %p136
        %s253 = sand.u32 %s126, 1
        %s254 = scalar_lea.sflag [#allocation7], %s253
        %s255 = sand.u32 %s126, 1
        %s256 = smul.addr %s255, 256
        %s257 = scalar_lea.vmem [#allocation10], %s256
        %s258 = smul.u32 32, %s29
        %p259 = scmp.lt.s32.totalorder %s28, 3
        %s260 = scalar_select %p259, %s28, 3
        %s261 = scalar_lea.vmem %s3, %s260
        %p262 = scmp.eq.s32.totalorder %s28, 3
        %s263 = scalar_select %p262, %s29, 0
        %s264 = smul.u32 32, %s263
        %p266 = scmp.eq.s32.totalorder %s28, 0
        %p267 = scmp.eq.s32.totalorder %s28, 3
        %p268 = scmp.eq.s32.totalorder %s29, 0
        %p269 = pnand %p266, %p268
        %p270 = pneg %p269
        // Predicated region
        $region41: #{tpu_custom_call.1} parent=31 // pred_check
          _
        $region42: #{tpu_custom_call.1} parent=31 // pred_check_branch
          %272 = sbr.rel (%p269) target = $region44
        $region43: #{tpu_custom_call.1} parent=31 // pred_region
          // Predicated region
          $region45: #{tpu_custom_call.1} parent=43 // pred_check
            _
          $region46: #{tpu_custom_call.1} parent=43 // pred_check_branch
            %274 = sbr.rel target = $region48
          $region47: #{tpu_custom_call.1} parent=43 // pred_region
            %275 = sst [smem:[#allocation13]] [#allocation12]
            %276 = sst [smem:[#allocation14]] [#allocation11]
          $region48: #{tpu_custom_call.1} parent=43 // pred_fallthru
            _
          %278 = shalt.err (0)
          %s280 = sshll.u32 [#allocation2], 4
          %s281 = int_to_ptr.vmem [resolvable:$true] %s280
          %283 = dma.hbm_to_vmem [thread:$0]  %s0, 8192, %s281, [#allocation4]
          %s284 = smul.u32 512, 1
          %s285 = sshll.u32 %s284, 4
          %286 = dma.done [#allocation4], %s285
        $region44: #{tpu_custom_call.1} parent=31 // pred_fallthru
          _
        // Predicated region
        $region49: #{tpu_custom_call.1} parent=31 // pred_check
          %p287 = pneg %p268
        $region50: #{tpu_custom_call.1} parent=31 // pred_check_branch
          %289 = sbr.rel (%p287) target = $region52
        $region51: #{tpu_custom_call.1} parent=31 // pred_region
          %v290 = vld [vmem:[#allocation2] sm:$0xff]
          %v291 = vld [vmem:[#allocation2 + $0x8] sm:$0xff]
          %v292 = vld [vmem:[#allocation2 + $0x10] sm:$0xff]
          %v293 = vld [vmem:[#allocation2 + $0x18] sm:$0xff]
          %v294 = vld [vmem:[#allocation2 + $0x20] sm:$0xff]
          %v295 = vld [vmem:[#allocation2 + $0x28] sm:$0xff]
          %v296 = vld [vmem:[#allocation2 + $0x30] sm:$0xff]
          %v297 = vld [vmem:[#allocation2 + $0x38] sm:$0xff]
          %v298 = vld [vmem:[#allocation2 + $0x40] sm:$0xff]
          %v299 = vld [vmem:[#allocation2 + $0x48] sm:$0xff]
          %v300 = vld [vmem:[#allocation2 + $0x50] sm:$0xff]
          %v301 = vld [vmem:[#allocation2 + $0x58] sm:$0xff]
          %v302 = vld [vmem:[#allocation2 + $0x60] sm:$0xff]
          %v303 = vld [vmem:[#allocation2 + $0x68] sm:$0xff]
          %v304 = vld [vmem:[#allocation2 + $0x70] sm:$0xff]
          %v305 = vld [vmem:[#allocation2 + $0x78] sm:$0xff]
          %v306 = vld [vmem:[#allocation2 + $0x80] sm:$0xff]
          %v307 = vld [vmem:[#allocation2 + $0x88] sm:$0xff]
          %v308 = vld [vmem:[#allocation2 + $0x90] sm:$0xff]
          %v309 = vld [vmem:[#allocation2 + $0x98] sm:$0xff]
          %v310 = vld [vmem:[#allocation2 + $0xa0] sm:$0xff]
          %v311 = vld [vmem:[#allocation2 + $0xa8] sm:$0xff]
          %v312 = vld [vmem:[#allocation2 + $0xb0] sm:$0xff]
          %v313 = vld [vmem:[#allocation2 + $0xb8] sm:$0xff]
          %v314 = vld [vmem:[#allocation2 + $0xc0] sm:$0xff]
          %v315 = vld [vmem:[#allocation2 + $0xc8] sm:$0xff]
          %v316 = vld [vmem:[#allocation2 + $0xd0] sm:$0xff]
          %v317 = vld [vmem:[#allocation2 + $0xd8] sm:$0xff]
          %v318 = vld [vmem:[#allocation2 + $0xe0] sm:$0xff]
          %v319 = vld [vmem:[#allocation2 + $0xe8] sm:$0xff]
          %v320 = vld [vmem:[#allocation2 + $0xf0] sm:$0xff]
          %v321 = vld [vmem:[#allocation2 + $0xf8] sm:$0xff]
          %v322 = vld [vmem:[#allocation2 + $0x100] sm:$0xff]
          %v323 = vld [vmem:[#allocation2 + $0x108] sm:$0xff]
          %v324 = vld [vmem:[#allocation2 + $0x110] sm:$0xff]
          %v325 = vld [vmem:[#allocation2 + $0x118] sm:$0xff]
          %v326 = vld [vmem:[#allocation2 + $0x120] sm:$0xff]
          %v327 = vld [vmem:[#allocation2 + $0x128] sm:$0xff]
          %v328 = vld [vmem:[#allocation2 + $0x130] sm:$0xff]
          %v329 = vld [vmem:[#allocation2 + $0x138] sm:$0xff]
          %v330 = vld [vmem:[#allocation2 + $0x140] sm:$0xff]
          %v331 = vld [vmem:[#allocation2 + $0x148] sm:$0xff]
          %v332 = vld [vmem:[#allocation2 + $0x150] sm:$0xff]
          %v333 = vld [vmem:[#allocation2 + $0x158] sm:$0xff]
          %v334 = vld [vmem:[#allocation2 + $0x160] sm:$0xff]
          %v335 = vld [vmem:[#allocation2 + $0x168] sm:$0xff]
          %v336 = vld [vmem:[#allocation2 + $0x170] sm:$0xff]
          %v337 = vld [vmem:[#allocation2 + $0x178] sm:$0xff]
          %v338 = vld [vmem:[#allocation2 + $0x180] sm:$0xff]
          %v339 = vld [vmem:[#allocation2 + $0x188] sm:$0xff]
          %v340 = vld [vmem:[#allocation2 + $0x190] sm:$0xff]
          %v341 = vld [vmem:[#allocation2 + $0x198] sm:$0xff]
          %v342 = vld [vmem:[#allocation2 + $0x1a0] sm:$0xff]
          %v343 = vld [vmem:[#allocation2 + $0x1a8] sm:$0xff]
          %v344 = vld [vmem:[#allocation2 + $0x1b0] sm:$0xff]
          %v345 = vld [vmem:[#allocation2 + $0x1b8] sm:$0xff]
          %v346 = vld [vmem:[#allocation2 + $0x1c0] sm:$0xff]
          %v347 = vld [vmem:[#allocation2 + $0x1c8] sm:$0xff]
          %v348 = vld [vmem:[#allocation2 + $0x1d0] sm:$0xff]
          %v349 = vld [vmem:[#allocation2 + $0x1d8] sm:$0xff]
          %v350 = vld [vmem:[#allocation2 + $0x1e0] sm:$0xff]
          %v351 = vld [vmem:[#allocation2 + $0x1e8] sm:$0xff]
          %v352 = vld [vmem:[#allocation2 + $0x1f0] sm:$0xff]
          %v353 = vld [vmem:[#allocation2 + $0x1f8] sm:$0xff]
          %v354 = vpack.c.bf16 %v291, %v290
          %v355 = vpack.c.bf16 %v293, %v292
          %v356 = vpack.c.bf16 %v295, %v294
          %v357 = vpack.c.bf16 %v297, %v296
          %v358 = vpack.c.bf16 %v299, %v298
          %v359 = vpack.c.bf16 %v301, %v300
          %v360 = vpack.c.bf16 %v303, %v302
          %v361 = vpack.c.bf16 %v305, %v304
          %v362 = vpack.c.bf16 %v307, %v306
          %v363 = vpack.c.bf16 %v309, %v308
          %v364 = vpack.c.bf16 %v311, %v310
          %v365 = vpack.c.bf16 %v313, %v312
          %v366 = vpack.c.bf16 %v315, %v314
          %v367 = vpack.c.bf16 %v317, %v316
          %v368 = vpack.c.bf16 %v319, %v318
          %v369 = vpack.c.bf16 %v321, %v320
          %v370 = vpack.c.bf16 %v323, %v322
          %v371 = vpack.c.bf16 %v325, %v324
          %v372 = vpack.c.bf16 %v327, %v326
          %v373 = vpack.c.bf16 %v329, %v328
          %v374 = vpack.c.bf16 %v331, %v330
          %v375 = vpack.c.bf16 %v333, %v332
          %v376 = vpack.c.bf16 %v335, %v334
          %v377 = vpack.c.bf16 %v337, %v336
          %v378 = vpack.c.bf16 %v339, %v338
          %v379 = vpack.c.bf16 %v341, %v340
          %v380 = vpack.c.bf16 %v343, %v342
          %v381 = vpack.c.bf16 %v345, %v344
          %v382 = vpack.c.bf16 %v347, %v346
          %v383 = vpack.c.bf16 %v349, %v348
          %v384 = vpack.c.bf16 %v351, %v350
          %v385 = vpack.c.bf16 %v353, %v352
          %v386 = vld [vmem:[%s227] sm:$0xf]
          %v387 = vld [vmem:[%s227 + $0x4] sm:$0xf]
          %v388 = vld [vmem:[%s227 + $0x8] sm:$0xf]
          %v389 = vld [vmem:[%s227 + $0xc] sm:$0xf]
          %v390 = vld [vmem:[%s227 + $0x10] sm:$0xf]
          %v391 = vld [vmem:[%s227 + $0x14] sm:$0xf]
          %v392 = vld [vmem:[%s227 + $0x18] sm:$0xf]
          %v393 = vld [vmem:[%s227 + $0x1c] sm:$0xf]
          %v394 = vld [vmem:[%s227 + $0x20] sm:$0xf]
          %v395 = vld [vmem:[%s227 + $0x24] sm:$0xf]
          %v396 = vld [vmem:[%s227 + $0x28] sm:$0xf]
          %v397 = vld [vmem:[%s227 + $0x2c] sm:$0xf]
          %v398 = vld [vmem:[%s227 + $0x30] sm:$0xf]
          %v399 = vld [vmem:[%s227 + $0x34] sm:$0xf]
          %v400 = vld [vmem:[%s227 + $0x38] sm:$0xf]
          %v401 = vld [vmem:[%s227 + $0x3c] sm:$0xf]
          %v418 = vunpack.c.l.b16 %v386
          %v419 = vunpack.c.l.b16 %v387
          %v420 = vunpack.c.l.b16 %v388
          %v421 = vunpack.c.l.b16 %v389
          %v422 = vunpack.c.l.b16 %v390
          %v423 = vunpack.c.l.b16 %v391
          %v424 = vunpack.c.l.b16 %v392
          %v425 = vunpack.c.l.b16 %v393
          %v426 = vunpack.c.l.b16 %v394
          %v427 = vunpack.c.l.b16 %v395
          %v428 = vunpack.c.l.b16 %v396
          %v429 = vunpack.c.l.b16 %v397
          %v430 = vunpack.c.l.b16 %v398
          %v431 = vunpack.c.l.b16 %v399
          %v432 = vunpack.c.l.b16 %v400
          %v433 = vunpack.c.l.b16 %v401
          %v434 = vpack.c.b16 %v419, %v418
          %v435 = vpack.c.b16 %v421, %v420
          %v436 = vpack.c.b16 %v423, %v422
          %v437 = vpack.c.b16 %v425, %v424
          %v438 = vpack.c.b16 %v427, %v426
          %v439 = vpack.c.b16 %v429, %v428
          %v440 = vpack.c.b16 %v431, %v430
          %v441 = vpack.c.b16 %v433, %v432
          %450 = vmatprep.subr.bf16.mxu0 0
          %451 = vmatpush1.bf16.msra.mxu0 %v434
          %452 = vmatprep.subr.bf16.mxu0 0
          %453 = vmatpush1.bf16.msra.mxu0 %v435
          %454 = vmatprep.subr.bf16.mxu0 0
          %455 = vmatpush1.bf16.msra.mxu0 %v436
          %456 = vmatprep.subr.bf16.mxu0 0
          %457 = vmatpush1.bf16.msra.mxu0 %v437
          %458 = vmatprep.subr.bf16.mxu0 0
          %459 = vmatpush1.bf16.msra.mxu0 %v438
          %460 = vmatprep.subr.bf16.mxu0 0
          %461 = vmatpush1.bf16.msra.mxu0 %v439
          %462 = vmatprep.subr.bf16.mxu0 0
          %463 = vmatpush1.bf16.msra.mxu0 %v440
          %464 = vmatprep.subr.bf16.mxu0 0
          %465 = vmatpush1.bf16.msra.mxu0 %v441
          %466 = vmatprep.subr.bf16.mxu0 0
          %467 = vmatpush1.bf16.msra.mxu0 0
          %468 = vmatprep.subr.bf16.mxu0 0
          %469 = vmatpush1.bf16.msra.mxu0 0
          %470 = vmatprep.subr.bf16.mxu0 0
          %471 = vmatpush1.bf16.msra.mxu0 0
          %472 = vmatprep.subr.bf16.mxu0 0
          %473 = vmatpush1.bf16.msra.mxu0 0
          %474 = vmatprep.subr.bf16.mxu0 0
          %475 = vmatpush1.bf16.msra.mxu0 0
          %476 = vmatprep.subr.bf16.mxu0 0
          %477 = vmatpush1.bf16.msra.mxu0 0
          %478 = vmatprep.subr.bf16.mxu0 0
          %479 = vmatpush1.bf16.msra.mxu0 0
          %480 = vmatprep.subr.bf16.mxu0 0
          %481 = vmatpush1.bf16.msra.mxu0 0
          %482 = vmatprep.mubr.bf16.mxu0 0
          %483 = vmatmul.mubr.bf16.gmra.mrb[0].mxu0 %v354
          %v484 = vpop.f32.mrb[0].mxu0
          %v485 = vadd.f32 0.0, %v484
          %v486 = vpop.f32.mrb[0].mxu0
          %v487 = vpop.f32.mrb[0].mxu0
          %v488 = vadd.f32 0.0, %v487
          %v489 = vpop.f32.mrb[0].mxu0
          %490 = vmatprep.mubr.bf16.mxu0 0
          %491 = vmatmul.mubr.bf16.gmra.mrb[0].mxu0 %v355
          %v492 = vpop.f32.mrb[0].mxu0
          %v493 = vadd.f32 0.0, %v492
          %v494 = vpop.f32.mrb[0].mxu0
          %v495 = vpop.f32.mrb[0].mxu0
          %v496 = vadd.f32 0.0, %v495
          %v497 = vpop.f32.mrb[0].mxu0
          %498 = vmatprep.mubr.bf16.mxu0 0
          %499 = vmatmul.mubr.bf16.gmra.mrb[0].mxu0 %v356
          %v500 = vpop.f32.mrb[0].mxu0
          %v501 = vadd.f32 0.0, %v500
          %v502 = vpop.f32.mrb[0].mxu0
          %v503 = vpop.f32.mrb[0].mxu0
          %v504 = vadd.f32 0.0, %v503
          %v505 = vpop.f32.mrb[0].mxu0
          %506 = vmatprep.mubr.bf16.mxu0 0
          %507 = vmatmul.mubr.bf16.gmra.mrb[0].mxu0 %v357
          %v508 = vpop.f32.mrb[0].mxu0
          %v509 = vadd.f32 0.0, %v508
          %v510 = vpop.f32.mrb[0].mxu0
          %v511 = vpop.f32.mrb[0].mxu0
          %v512 = vadd.f32 0.0, %v511
          %v513 = vpop.f32.mrb[0].mxu0
          %514 = vmatprep.mubr.bf16.mxu0 0
          %515 = vmatmul.mubr.bf16.gmra.mrb[0].mxu0 %v358
          %v516 = vpop.f32.mrb[0].mxu0
          %v517 = vadd.f32 0.0, %v516
          %v518 = vpop.f32.mrb[0].mxu0
          %v519 = vpop.f32.mrb[0].mxu0
          %v520 = vadd.f32 0.0, %v519
          %v521 = vpop.f32.mrb[0].mxu0
          %522 = vmatprep.mubr.bf16.mxu0 0
          %523 = vmatmul.mubr.bf16.gmra.mrb[0].mxu0 %v359
          %v524 = vpop.f32.mrb[0].mxu0
          %v525 = vadd.f32 0.0, %v524
          %v526 = vpop.f32.mrb[0].mxu0
          %v527 = vpop.f32.mrb[0].mxu0
          %v528 = vadd.f32 0.0, %v527
          %v529 = vpop.f32.mrb[0].mxu0
          %530 = vmatprep.mubr.bf16.mxu0 0
          %531 = vmatmul.mubr.bf16.gmra.mrb[0].mxu0 %v360
          %v532 = vpop.f32.mrb[0].mxu0
          %v533 = vadd.f32 0.0, %v532
          %v534 = vpop.f32.mrb[0].mxu0
          %v535 = vpop.f32.mrb[0].mxu0
          %v536 = vadd.f32 0.0, %v535
          %v537 = vpop.f32.mrb[0].mxu0
          %538 = vmatprep.mubr.bf16.mxu0 0
          %539 = vmatmul.mubr.bf16.gmra.mrb[0].mxu0 %v361
          %v540 = vpop.f32.mrb[0].mxu0
          %v541 = vadd.f32 0.0, %v540
          %v542 = vpop.f32.mrb[0].mxu0
          %v543 = vpop.f32.mrb[0].mxu0
          %v544 = vadd.f32 0.0, %v543
          %v545 = vpop.f32.mrb[0].mxu0
          %546 = vmatprep.mubr.bf16.mxu0 0
          %547 = vmatmul.mubr.bf16.gmra.mrb[0].mxu0 %v362
          %v548 = vpop.f32.mrb[0].mxu0
          %v549 = vadd.f32 0.0, %v548
          %v550 = vpop.f32.mrb[0].mxu0
          %v551 = vpop.f32.mrb[0].mxu0
          %v552 = vadd.f32 0.0, %v551
          %v553 = vpop.f32.mrb[0].mxu0
          %554 = vmatprep.mubr.bf16.mxu0 0
          %555 = vmatmul.mubr.bf16.gmra.mrb[0].mxu0 %v363
          %v556 = vpop.f32.mrb[0].mxu0
          %v557 = vadd.f32 0.0, %v556
          %v558 = vpop.f32.mrb[0].mxu0
          %v559 = vpop.f32.mrb[0].mxu0
          %v560 = vadd.f32 0.0, %v559
          %v561 = vpop.f32.mrb[0].mxu0
          %562 = vmatprep.mubr.bf16.mxu0 0
          %563 = vmatmul.mubr.bf16.gmra.mrb[0].mxu0 %v364
          %v564 = vpop.f32.mrb[0].mxu0
          %v565 = vadd.f32 0.0, %v564
          %v566 = vpop.f32.mrb[0].mxu0
          %v567 = vpop.f32.mrb[0].mxu0
          %v568 = vadd.f32 0.0, %v567
          %v569 = vpop.f32.mrb[0].mxu0
          %570 = vmatprep.mubr.bf16.mxu0 0
          %571 = vmatmul.mubr.bf16.gmra.mrb[0].mxu0 %v365
          %v572 = vpop.f32.mrb[0].mxu0
          %v573 = vadd.f32 0.0, %v572
          %v574 = vpop.f32.mrb[0].mxu0
          %v575 = vpop.f32.mrb[0].mxu0
          %v576 = vadd.f32 0.0, %v575
          %v577 = vpop.f32.mrb[0].mxu0
          %578 = vmatprep.mubr.bf16.mxu0 0
          %579 = vmatmul.mubr.bf16.gmra.mrb[0].mxu0 %v366
          %v580 = vpop.f32.mrb[0].mxu0
          %v581 = vadd.f32 0.0, %v580
          %v582 = vpop.f32.mrb[0].mxu0
          %v583 = vpop.f32.mrb[0].mxu0
          %v584 = vadd.f32 0.0, %v583
          %v585 = vpop.f32.mrb[0].mxu0
          %586 = vmatprep.mubr.bf16.mxu0 0
          %587 = vmatmul.mubr.bf16.gmra.mrb[0].mxu0 %v367
          %v588 = vpop.f32.mrb[0].mxu0
          %v589 = vadd.f32 0.0, %v588
          %v590 = vpop.f32.mrb[0].mxu0
          %v591 = vpop.f32.mrb[0].mxu0
          %v592 = vadd.f32 0.0, %v591
          %v593 = vpop.f32.mrb[0].mxu0
          %594 = vmatprep.mubr.bf16.mxu0 0
          %595 = vmatmul.mubr.bf16.gmra.mrb[0].mxu0 %v368
          %v596 = vpop.f32.mrb[0].mxu0
          %v597 = vadd.f32 0.0, %v596
          %v598 = vpop.f32.mrb[0].mxu0
          %v599 = vpop.f32.mrb[0].mxu0
          %v600 = vadd.f32 0.0, %v599
          %v601 = vpop.f32.mrb[0].mxu0
          %602 = vmatprep.mubr.bf16.mxu0 0
          %603 = vmatmul.mubr.bf16.gmra.mrb[0].mxu0 %v369
          %v604 = vpop.f32.mrb[0].mxu0
          %v605 = vadd.f32 0.0, %v604
          %v606 = vpop.f32.mrb[0].mxu0
          %v607 = vpop.f32.mrb[0].mxu0
          %v608 = vadd.f32 0.0, %v607
          %v609 = vpop.f32.mrb[0].mxu0
          %610 = vmatprep.mubr.bf16.mxu0 0
          %611 = vmatmul.mubr.bf16.gmra.mrb[0].mxu0 %v370
          %v612 = vpop.f32.mrb[0].mxu0
          %v613 = vadd.f32 0.0, %v612
          %v614 = vpop.f32.mrb[0].mxu0
          %v615 = vpop.f32.mrb[0].mxu0
          %v616 = vadd.f32 0.0, %v615
          %v617 = vpop.f32.mrb[0].mxu0
          %618 = vmatprep.mubr.bf16.mxu0 0
          %619 = vmatmul.mubr.bf16.gmra.mrb[0].mxu0 %v371
          %v620 = vpop.f32.mrb[0].mxu0
          %v621 = vadd.f32 0.0, %v620
          %v622 = vpop.f32.mrb[0].mxu0
          %v623 = vpop.f32.mrb[0].mxu0
          %v624 = vadd.f32 0.0, %v623
          %v625 = vpop.f32.mrb[0].mxu0
          %626 = vmatprep.mubr.bf16.mxu0 0
          %627 = vmatmul.mubr.bf16.gmra.mrb[0].mxu0 %v372
          %v628 = vpop.f32.mrb[0].mxu0
          %v629 = vadd.f32 0.0, %v628
          %v630 = vpop.f32.mrb[0].mxu0
          %v631 = vpop.f32.mrb[0].mxu0
          %v632 = vadd.f32 0.0, %v631
          %v633 = vpop.f32.mrb[0].mxu0
          %634 = vmatprep.mubr.bf16.mxu0 0
          %635 = vmatmul.mubr.bf16.gmra.mrb[0].mxu0 %v373
          %v636 = vpop.f32.mrb[0].mxu0
          %v637 = vadd.f32 0.0, %v636
          %v638 = vpop.f32.mrb[0].mxu0
          %v639 = vpop.f32.mrb[0].mxu0
          %v640 = vadd.f32 0.0, %v639
          %v641 = vpop.f32.mrb[0].mxu0
          %642 = vmatprep.mubr.bf16.mxu0 0
          %643 = vmatmul.mubr.bf16.gmra.mrb[0].mxu0 %v374
          %v644 = vpop.f32.mrb[0].mxu0
          %v645 = vadd.f32 0.0, %v644
          %v646 = vpop.f32.mrb[0].mxu0
          %v647 = vpop.f32.mrb[0].mxu0
          %v648 = vadd.f32 0.0, %v647
          %v649 = vpop.f32.mrb[0].mxu0
          %650 = vmatprep.mubr.bf16.mxu0 0
          %651 = vmatmul.mubr.bf16.gmra.mrb[0].mxu0 %v375
          %v652 = vpop.f32.mrb[0].mxu0
          %v653 = vadd.f32 0.0, %v652
          %v654 = vpop.f32.mrb[0].mxu0
          %v655 = vpop.f32.mrb[0].mxu0
          %v656 = vadd.f32 0.0, %v655
          %v657 = vpop.f32.mrb[0].mxu0
          %658 = vmatprep.mubr.bf16.mxu0 0
          %659 = vmatmul.mubr.bf16.gmra.mrb[0].mxu0 %v376
          %v660 = vpop.f32.mrb[0].mxu0
          %v661 = vadd.f32 0.0, %v660
          %v662 = vpop.f32.mrb[0].mxu0
          %v663 = vpop.f32.mrb[0].mxu0
          %v664 = vadd.f32 0.0, %v663
          %v665 = vpop.f32.mrb[0].mxu0
          %666 = vmatprep.mubr.bf16.mxu0 0
          %667 = vmatmul.mubr.bf16.gmra.mrb[0].mxu0 %v377
          %v668 = vpop.f32.mrb[0].mxu0
          %v669 = vadd.f32 0.0, %v668
          %v670 = vpop.f32.mrb[0].mxu0
          %v671 = vpop.f32.mrb[0].mxu0
          %v672 = vadd.f32 0.0, %v671
          %v673 = vpop.f32.mrb[0].mxu0
          %674 = vmatprep.mubr.bf16.mxu0 0
          %675 = vmatmul.mubr.bf16.gmra.mrb[0].mxu0 %v378
          %v676 = vpop.f32.mrb[0].mxu0
          %v677 = vadd.f32 0.0, %v676
          %v678 = vpop.f32.mrb[0].mxu0
          %v679 = vpop.f32.mrb[0].mxu0
          %v680 = vadd.f32 0.0, %v679
          %v681 = vpop.f32.mrb[0].mxu0
          %682 = vmatprep.mubr.bf16.mxu0 0
          %683 = vmatmul.mubr.bf16.gmra.mrb[0].mxu0 %v379
          %v684 = vpop.f32.mrb[0].mxu0
          %v685 = vadd.f32 0.0, %v684
          %v686 = vpop.f32.mrb[0].mxu0
          %v687 = vpop.f32.mrb[0].mxu0
          %v688 = vadd.f32 0.0, %v687
          %v689 = vpop.f32.mrb[0].mxu0
          %690 = vmatprep.mubr.bf16.mxu0 0
          %691 = vmatmul.mubr.bf16.gmra.mrb[0].mxu0 %v380
          %v692 = vpop.f32.mrb[0].mxu0
          %v693 = vadd.f32 0.0, %v692
          %v694 = vpop.f32.mrb[0].mxu0
          %v695 = vpop.f32.mrb[0].mxu0
          %v696 = vadd.f32 0.0, %v695
          %v697 = vpop.f32.mrb[0].mxu0
          %698 = vmatprep.mubr.bf16.mxu0 0
          %699 = vmatmul.mubr.bf16.gmra.mrb[0].mxu0 %v381
          %v700 = vpop.f32.mrb[0].mxu0
          %v701 = vadd.f32 0.0, %v700
          %v702 = vpop.f32.mrb[0].mxu0
          %v703 = vpop.f32.mrb[0].mxu0
          %v704 = vadd.f32 0.0, %v703
          %v705 = vpop.f32.mrb[0].mxu0
          %706 = vmatprep.mubr.bf16.mxu0 0
          %707 = vmatmul.mubr.bf16.gmra.mrb[0].mxu0 %v382
          %v708 = vpop.f32.mrb[0].mxu0
          %v709 = vadd.f32 0.0, %v708
          %v710 = vpop.f32.mrb[0].mxu0
          %v711 = vpop.f32.mrb[0].mxu0
          %v712 = vadd.f32 0.0, %v711
          %v713 = vpop.f32.mrb[0].mxu0
          %714 = vmatprep.mubr.bf16.mxu0 0
          %715 = vmatmul.mubr.bf16.gmra.mrb[0].mxu0 %v383
          %v716 = vpop.f32.mrb[0].mxu0
          %v717 = vadd.f32 0.0, %v716
          %v718 = vpop.f32.mrb[0].mxu0
          %v719 = vpop.f32.mrb[0].mxu0
          %v720 = vadd.f32 0.0, %v719
          %v721 = vpop.f32.mrb[0].mxu0
          %722 = vmatprep.mubr.bf16.mxu0 0
          %723 = vmatmul.mubr.bf16.gmra.mrb[0].mxu0 %v384
          %v724 = vpop.f32.mrb[0].mxu0
          %v725 = vadd.f32 0.0, %v724
          %v726 = vpop.f32.mrb[0].mxu0
          %v727 = vpop.f32.mrb[0].mxu0
          %v728 = vadd.f32 0.0, %v727
          %v729 = vpop.f32.mrb[0].mxu0
          %730 = vmatprep.mubr.bf16.mxu0 0
          %731 = vmatmul.mubr.bf16.gmra.mrb[0].mxu0 %v385
          %v732 = vpop.f32.mrb[0].mxu0
          %v733 = vadd.f32 0.0, %v732
          %v734 = vpop.f32.mrb[0].mxu0
          %v735 = vpop.f32.mrb[0].mxu0
          %v736 = vadd.f32 0.0, %v735
          %v737 = vpop.f32.mrb[0].mxu0
          %738 = vdwg.mxu0
          %v739 = vpack.c.bf16 %v488, %v485
          %v740 = vpack.c.bf16 %v496, %v493
          %v741 = vpack.c.bf16 %v504, %v501
          %v742 = vpack.c.bf16 %v512, %v509
          %v743 = vpack.c.bf16 %v520, %v517
          %v744 = vpack.c.bf16 %v528, %v525
          %v745 = vpack.c.bf16 %v536, %v533
          %v746 = vpack.c.bf16 %v544, %v541
          %v747 = vpack.c.bf16 %v552, %v549
          %v748 = vpack.c.bf16 %v560, %v557
          %v749 = vpack.c.bf16 %v568, %v565
          %v750 = vpack.c.bf16 %v576, %v573
          %v751 = vpack.c.bf16 %v584, %v581
          %v752 = vpack.c.bf16 %v592, %v589
          %v753 = vpack.c.bf16 %v600, %v597
          %v754 = vpack.c.bf16 %v608, %v605
          %v755 = vpack.c.bf16 %v616, %v613
          %v756 = vpack.c.bf16 %v624, %v621
          %v757 = vpack.c.bf16 %v632, %v629
          %v758 = vpack.c.bf16 %v640, %v637
          %v759 = vpack.c.bf16 %v648, %v645
          %v760 = vpack.c.bf16 %v656, %v653
          %v761 = vpack.c.bf16 %v664, %v661
          %v762 = vpack.c.bf16 %v672, %v669
          %v763 = vpack.c.bf16 %v680, %v677
          %v764 = vpack.c.bf16 %v688, %v685
          %v765 = vpack.c.bf16 %v696, %v693
          %v766 = vpack.c.bf16 %v704, %v701
          %v767 = vpack.c.bf16 %v712, %v709
          %v768 = vpack.c.bf16 %v720, %v717
          %v769 = vpack.c.bf16 %v728, %v725
          %v770 = vpack.c.bf16 %v736, %v733
          %771 = vst [vmem:[#allocation3] sm:$0xff] %v739
          %772 = vst [vmem:[#allocation3 + $0x8] sm:$0xff] %v740
          %773 = vst [vmem:[#allocation3 + $0x10] sm:$0xff] %v741
          %774 = vst [vmem:[#allocation3 + $0x18] sm:$0xff] %v742
          %775 = vst [vmem:[#allocation3 + $0x20] sm:$0xff] %v743
          %776 = vst [vmem:[#allocation3 + $0x28] sm:$0xff] %v744
          %777 = vst [vmem:[#allocation3 + $0x30] sm:$0xff] %v745
          %778 = vst [vmem:[#allocation3 + $0x38] sm:$0xff] %v746
          %779 = vst [vmem:[#allocation3 + $0x40] sm:$0xff] %v747
          %780 = vst [vmem:[#allocation3 + $0x48] sm:$0xff] %v748
          %781 = vst [vmem:[#allocation3 + $0x50] sm:$0xff] %v749
          %782 = vst [vmem:[#allocation3 + $0x58] sm:$0xff] %v750
          %783 = vst [vmem:[#allocation3 + $0x60] sm:$0xff] %v751
          %784 = vst [vmem:[#allocation3 + $0x68] sm:$0xff] %v752
          %785 = vst [vmem:[#allocation3 + $0x70] sm:$0xff] %v753
          %786 = vst [vmem:[#allocation3 + $0x78] sm:$0xff] %v754
          %787 = vst [vmem:[#allocation3 + $0x80] sm:$0xff] %v755
          %788 = vst [vmem:[#allocation3 + $0x88] sm:$0xff] %v756
          %789 = vst [vmem:[#allocation3 + $0x90] sm:$0xff] %v757
          %790 = vst [vmem:[#allocation3 + $0x98] sm:$0xff] %v758
          %791 = vst [vmem:[#allocation3 + $0xa0] sm:$0xff] %v759
          %792 = vst [vmem:[#allocation3 + $0xa8] sm:$0xff] %v760
          %793 = vst [vmem:[#allocation3 + $0xb0] sm:$0xff] %v761
          %794 = vst [vmem:[#allocation3 + $0xb8] sm:$0xff] %v762
          %795 = vst [vmem:[#allocation3 + $0xc0] sm:$0xff] %v763
          %796 = vst [vmem:[#allocation3 + $0xc8] sm:$0xff] %v764
          %797 = vst [vmem:[#allocation3 + $0xd0] sm:$0xff] %v765
          %798 = vst [vmem:[#allocation3 + $0xd8] sm:$0xff] %v766
          %799 = vst [vmem:[#allocation3 + $0xe0] sm:$0xff] %v767
          %800 = vst [vmem:[#allocation3 + $0xe8] sm:$0xff] %v768
          %801 = vst [vmem:[#allocation3 + $0xf0] sm:$0xff] %v769
          %802 = vst [vmem:[#allocation3 + $0xf8] sm:$0xff] %v770
        $region52: #{tpu_custom_call.1} parent=31 // pred_fallthru
          _
        %v803 = vld [vmem:[%s218] sm:$0xff]
        %v804 = vld [vmem:[%s218 + $0x8] sm:$0xff]
        %v805 = vld [vmem:[%s218 + $0x10] sm:$0xff]
        %v806 = vld [vmem:[%s218 + $0x18] sm:$0xff]
        %v807 = vld [vmem:[%s218 + $0x20] sm:$0xff]
        %v808 = vld [vmem:[%s218 + $0x28] sm:$0xff]
        %v809 = vld [vmem:[%s218 + $0x30] sm:$0xff]
        %v810 = vld [vmem:[%s218 + $0x38] sm:$0xff]
        %v811 = vld [vmem:[%s218 + $0x40] sm:$0xff]
        %v812 = vld [vmem:[%s218 + $0x48] sm:$0xff]
        %v813 = vld [vmem:[%s218 + $0x50] sm:$0xff]
        %v814 = vld [vmem:[%s218 + $0x58] sm:$0xff]
        %v815 = vld [vmem:[%s218 + $0x60] sm:$0xff]
        %v816 = vld [vmem:[%s218 + $0x68] sm:$0xff]
        %v817 = vld [vmem:[%s218 + $0x70] sm:$0xff]
        %v818 = vld [vmem:[%s218 + $0x78] sm:$0xff]
        %v819 = vld [vmem:[%s218 + $0x80] sm:$0xff]
        %v820 = vld [vmem:[%s218 + $0x88] sm:$0xff]
        %v821 = vld [vmem:[%s218 + $0x90] sm:$0xff]
        %v822 = vld [vmem:[%s218 + $0x98] sm:$0xff]
        %v823 = vld [vmem:[%s218 + $0xa0] sm:$0xff]
        %v824 = vld [vmem:[%s218 + $0xa8] sm:$0xff]
        %v825 = vld [vmem:[%s218 + $0xb0] sm:$0xff]
        %v826 = vld [vmem:[%s218 + $0xb8] sm:$0xff]
        %v827 = vld [vmem:[%s218 + $0xc0] sm:$0xff]
        %v828 = vld [vmem:[%s218 + $0xc8] sm:$0xff]
        %v829 = vld [vmem:[%s218 + $0xd0] sm:$0xff]
        %v830 = vld [vmem:[%s218 + $0xd8] sm:$0xff]
        %v831 = vld [vmem:[%s218 + $0xe0] sm:$0xff]
        %v832 = vld [vmem:[%s218 + $0xe8] sm:$0xff]
        %v833 = vld [vmem:[%s218 + $0xf0] sm:$0xff]
        %v834 = vld [vmem:[%s218 + $0xf8] sm:$0xff]
        %v835 = vld [vmem:[%s218 + $0x100] sm:$0xff]
        %v836 = vld [vmem:[%s218 + $0x108] sm:$0xff]
        %v837 = vld [vmem:[%s218 + $0x110] sm:$0xff]
        %v838 = vld [vmem:[%s218 + $0x118] sm:$0xff]
        %v839 = vld [vmem:[%s218 + $0x120] sm:$0xff]
        %v840 = vld [vmem:[%s218 + $0x128] sm:$0xff]
        %v841 = vld [vmem:[%s218 + $0x130] sm:$0xff]
        %v842 = vld [vmem:[%s218 + $0x138] sm:$0xff]
        %v843 = vld [vmem:[%s218 + $0x140] sm:$0xff]
        %v844 = vld [vmem:[%s218 + $0x148] sm:$0xff]
        %v845 = vld [vmem:[%s218 + $0x150] sm:$0xff]
        %v846 = vld [vmem:[%s218 + $0x158] sm:$0xff]
        %v847 = vld [vmem:[%s218 + $0x160] sm:$0xff]
        %v848 = vld [vmem:[%s218 + $0x168] sm:$0xff]
        %v849 = vld [vmem:[%s218 + $0x170] sm:$0xff]
        %v850 = vld [vmem:[%s218 + $0x178] sm:$0xff]
        %v851 = vld [vmem:[%s218 + $0x180] sm:$0xff]
        %v852 = vld [vmem:[%s218 + $0x188] sm:$0xff]
        %v853 = vld [vmem:[%s218 + $0x190] sm:$0xff]
        %v854 = vld [vmem:[%s218 + $0x198] sm:$0xff]
        %v855 = vld [vmem:[%s218 + $0x1a0] sm:$0xff]
        %v856 = vld [vmem:[%s218 + $0x1a8] sm:$0xff]
        %v857 = vld [vmem:[%s218 + $0x1b0] sm:$0xff]
        %v858 = vld [vmem:[%s218 + $0x1b8] sm:$0xff]
        %v859 = vld [vmem:[%s218 + $0x1c0] sm:$0xff]
        %v860 = vld [vmem:[%s218 + $0x1c8] sm:$0xff]
        %v861 = vld [vmem:[%s218 + $0x1d0] sm:$0xff]
        %v862 = vld [vmem:[%s218 + $0x1d8] sm:$0xff]
        %v863 = vld [vmem:[%s218 + $0x1e0] sm:$0xff]
        %v864 = vld [vmem:[%s218 + $0x1e8] sm:$0xff]
        %v865 = vld [vmem:[%s218 + $0x1f0] sm:$0xff]
        %v866 = vld [vmem:[%s218 + $0x1f8] sm:$0xff]
        %v867 = vld [vmem:[#allocation3] sm:$0xff]
        %v868 = vld [vmem:[#allocation3 + $0x8] sm:$0xff]
        %v869 = vld [vmem:[#allocation3 + $0x10] sm:$0xff]
        %v870 = vld [vmem:[#allocation3 + $0x18] sm:$0xff]
        %v871 = vld [vmem:[#allocation3 + $0x20] sm:$0xff]
        %v872 = vld [vmem:[#allocation3 + $0x28] sm:$0xff]
        %v873 = vld [vmem:[#allocation3 + $0x30] sm:$0xff]
        %v874 = vld [vmem:[#allocation3 + $0x38] sm:$0xff]
        %v875 = vld [vmem:[#allocation3 + $0x40] sm:$0xff]
        %v876 = vld [vmem:[#allocation3 + $0x48] sm:$0xff]
        %v877 = vld [vmem:[#allocation3 + $0x50] sm:$0xff]
        %v878 = vld [vmem:[#allocation3 + $0x58] sm:$0xff]
        %v879 = vld [vmem:[#allocation3 + $0x60] sm:$0xff]
        %v880 = vld [vmem:[#allocation3 + $0x68] sm:$0xff]
        %v881 = vld [vmem:[#allocation3 + $0x70] sm:$0xff]
        %v882 = vld [vmem:[#allocation3 + $0x78] sm:$0xff]
        %v883 = vld [vmem:[#allocation3 + $0x80] sm:$0xff]
        %v884 = vld [vmem:[#allocation3 + $0x88] sm:$0xff]
        %v885 = vld [vmem:[#allocation3 + $0x90] sm:$0xff]
        %v886 = vld [vmem:[#allocation3 + $0x98] sm:$0xff]
        %v887 = vld [vmem:[#allocation3 + $0xa0] sm:$0xff]
        %v888 = vld [vmem:[#allocation3 + $0xa8] sm:$0xff]
        %v889 = vld [vmem:[#allocation3 + $0xb0] sm:$0xff]
        %v890 = vld [vmem:[#allocation3 + $0xb8] sm:$0xff]
        %v891 = vld [vmem:[#allocation3 + $0xc0] sm:$0xff]
        %v892 = vld [vmem:[#allocation3 + $0xc8] sm:$0xff]
        %v893 = vld [vmem:[#allocation3 + $0xd0] sm:$0xff]
        %v894 = vld [vmem:[#allocation3 + $0xd8] sm:$0xff]
        %v895 = vld [vmem:[#allocation3 + $0xe0] sm:$0xff]
        %v896 = vld [vmem:[#allocation3 + $0xe8] sm:$0xff]
        %v897 = vld [vmem:[#allocation3 + $0xf0] sm:$0xff]
        %v898 = vld [vmem:[#allocation3 + $0xf8] sm:$0xff]
        %v899 = vld [vmem:[%s261] sm:$0x1]
        %v901 = vlaneseq
        %v902 = vshrl.u32 %v901, 7
        %v903 = vsub.s32 0, %v902
        %v904 = vrot.slane %v899, %v903
        %v970 = vunpack.c.l.b16 %v803
        %v971 = vunpack.c.h.b16 %v803
        %v972 = vunpack.c.l.b16 %v804
        %v973 = vunpack.c.h.b16 %v804
        %v974 = vunpack.c.l.b16 %v805
        %v975 = vunpack.c.h.b16 %v805
        %v976 = vunpack.c.l.b16 %v806
        %v977 = vunpack.c.h.b16 %v806
        %v978 = vunpack.c.l.b16 %v807
        %v979 = vunpack.c.h.b16 %v807
        %v980 = vunpack.c.l.b16 %v808
        %v981 = vunpack.c.h.b16 %v808
        %v982 = vunpack.c.l.b16 %v809
        %v983 = vunpack.c.h.b16 %v809
        %v984 = vunpack.c.l.b16 %v810
        %v985 = vunpack.c.h.b16 %v810
        %v986 = vunpack.c.l.b16 %v811
        %v987 = vunpack.c.h.b16 %v811
        %v988 = vunpack.c.l.b16 %v812
        %v989 = vunpack.c.h.b16 %v812
        %v990 = vunpack.c.l.b16 %v813
        %v991 = vunpack.c.h.b16 %v813
        %v992 = vunpack.c.l.b16 %v814
        %v993 = vunpack.c.h.b16 %v814
        %v994 = vunpack.c.l.b16 %v815
        %v995 = vunpack.c.h.b16 %v815
        %v996 = vunpack.c.l.b16 %v816
        %v997 = vunpack.c.h.b16 %v816
        %v998 = vunpack.c.l.b16 %v817
        %v999 = vunpack.c.h.b16 %v817
        %v1000 = vunpack.c.l.b16 %v818
        %v1001 = vunpack.c.h.b16 %v818
        %v1002 = vunpack.c.l.b16 %v819
        %v1003 = vunpack.c.h.b16 %v819
        %v1004 = vunpack.c.l.b16 %v820
        %v1005 = vunpack.c.h.b16 %v820
        %v1006 = vunpack.c.l.b16 %v821
        %v1007 = vunpack.c.h.b16 %v821
        %v1008 = vunpack.c.l.b16 %v822
        %v1009 = vunpack.c.h.b16 %v822
        %v1010 = vunpack.c.l.b16 %v823
        %v1011 = vunpack.c.h.b16 %v823
        %v1012 = vunpack.c.l.b16 %v824
        %v1013 = vunpack.c.h.b16 %v824
        %v1014 = vunpack.c.l.b16 %v825
        %v1015 = vunpack.c.h.b16 %v825
        %v1016 = vunpack.c.l.b16 %v826
        %v1017 = vunpack.c.h.b16 %v826
        %v1018 = vunpack.c.l.b16 %v827
        %v1019 = vunpack.c.h.b16 %v827
        %v1020 = vunpack.c.l.b16 %v828
        %v1021 = vunpack.c.h.b16 %v828
        %v1022 = vunpack.c.l.b16 %v829
        %v1023 = vunpack.c.h.b16 %v829
        %v1024 = vunpack.c.l.b16 %v830
        %v1025 = vunpack.c.h.b16 %v830
        %v1026 = vunpack.c.l.b16 %v831
        %v1027 = vunpack.c.h.b16 %v831
        %v1028 = vunpack.c.l.b16 %v832
        %v1029 = vunpack.c.h.b16 %v832
        %v1030 = vunpack.c.l.b16 %v833
        %v1031 = vunpack.c.h.b16 %v833
        %v1032 = vunpack.c.l.b16 %v834
        %v1033 = vunpack.c.h.b16 %v834
        %v1034 = vunpack.c.l.b16 %v835
        %v1035 = vunpack.c.h.b16 %v835
        %v1036 = vunpack.c.l.b16 %v836
        %v1037 = vunpack.c.h.b16 %v836
        %v1038 = vunpack.c.l.b16 %v837
        %v1039 = vunpack.c.h.b16 %v837
        %v1040 = vunpack.c.l.b16 %v838
        %v1041 = vunpack.c.h.b16 %v838
        %v1042 = vunpack.c.l.b16 %v839
        %v1043 = vunpack.c.h.b16 %v839
        %v1044 = vunpack.c.l.b16 %v840
        %v1045 = vunpack.c.h.b16 %v840
        %v1046 = vunpack.c.l.b16 %v841
        %v1047 = vunpack.c.h.b16 %v841
        %v1048 = vunpack.c.l.b16 %v842
        %v1049 = vunpack.c.h.b16 %v842
        %v1050 = vunpack.c.l.b16 %v843
        %v1051 = vunpack.c.h.b16 %v843
        %v1052 = vunpack.c.l.b16 %v844
        %v1053 = vunpack.c.h.b16 %v844
        %v1054 = vunpack.c.l.b16 %v845
        %v1055 = vunpack.c.h.b16 %v845
        %v1056 = vunpack.c.l.b16 %v846
        %v1057 = vunpack.c.h.b16 %v846
        %v1058 = vunpack.c.l.b16 %v847
        %v1059 = vunpack.c.h.b16 %v847
        %v1060 = vunpack.c.l.b16 %v848
        %v1061 = vunpack.c.h.b16 %v848
        %v1062 = vunpack.c.l.b16 %v849
        %v1063 = vunpack.c.h.b16 %v849
        %v1064 = vunpack.c.l.b16 %v850
        %v1065 = vunpack.c.h.b16 %v850
        %v1066 = vunpack.c.l.b16 %v851
        %v1067 = vunpack.c.h.b16 %v851
        %v1068 = vunpack.c.l.b16 %v852
        %v1069 = vunpack.c.h.b16 %v852
        %v1070 = vunpack.c.l.b16 %v853
        %v1071 = vunpack.c.h.b16 %v853
        %v1072 = vunpack.c.l.b16 %v854
        %v1073 = vunpack.c.h.b16 %v854
        %v1074 = vunpack.c.l.b16 %v855
        %v1075 = vunpack.c.h.b16 %v855
        %v1076 = vunpack.c.l.b16 %v856
        %v1077 = vunpack.c.h.b16 %v856
        %v1078 = vunpack.c.l.b16 %v857
        %v1079 = vunpack.c.h.b16 %v857
        %v1080 = vunpack.c.l.b16 %v858
        %v1081 = vunpack.c.h.b16 %v858
        %v1082 = vunpack.c.l.b16 %v859
        %v1083 = vunpack.c.h.b16 %v859
        %v1084 = vunpack.c.l.b16 %v860
        %v1085 = vunpack.c.h.b16 %v860
        %v1086 = vunpack.c.l.b16 %v861
        %v1087 = vunpack.c.h.b16 %v861
        %v1088 = vunpack.c.l.b16 %v862
        %v1089 = vunpack.c.h.b16 %v862
        %v1090 = vunpack.c.l.b16 %v863
        %v1091 = vunpack.c.h.b16 %v863
        %v1092 = vunpack.c.l.b16 %v864
        %v1093 = vunpack.c.h.b16 %v864
        %v1094 = vunpack.c.l.b16 %v865
        %v1095 = vunpack.c.h.b16 %v865
        %v1096 = vunpack.c.l.b16 %v866
        %v1097 = vunpack.c.h.b16 %v866
        %v1098 = vpack.c.b16 %v974, %v970
        %v1099 = vpack.c.b16 %v975, %v971
        %v1100 = vpack.c.b16 %v976, %v972
        %v1101 = vpack.c.b16 %v977, %v973
        %v1102 = vpack.c.b16 %v982, %v978
        %v1103 = vpack.c.b16 %v983, %v979
        %v1104 = vpack.c.b16 %v984, %v980
        %v1105 = vpack.c.b16 %v985, %v981
        %v1106 = vpack.c.b16 %v990, %v986
        %v1107 = vpack.c.b16 %v991, %v987
        %v1108 = vpack.c.b16 %v992, %v988
        %v1109 = vpack.c.b16 %v993, %v989
        %v1110 = vpack.c.b16 %v998, %v994
        %v1111 = vpack.c.b16 %v999, %v995
        %v1112 = vpack.c.b16 %v1000, %v996
        %v1113 = vpack.c.b16 %v1001, %v997
        %v1114 = vpack.c.b16 %v1006, %v1002
        %v1115 = vpack.c.b16 %v1007, %v1003
        %v1116 = vpack.c.b16 %v1008, %v1004
        %v1117 = vpack.c.b16 %v1009, %v1005
        %v1118 = vpack.c.b16 %v1014, %v1010
        %v1119 = vpack.c.b16 %v1015, %v1011
        %v1120 = vpack.c.b16 %v1016, %v1012
        %v1121 = vpack.c.b16 %v1017, %v1013
        %v1122 = vpack.c.b16 %v1022, %v1018
        %v1123 = vpack.c.b16 %v1023, %v1019
        %v1124 = vpack.c.b16 %v1024, %v1020
        %v1125 = vpack.c.b16 %v1025, %v1021
        %v1126 = vpack.c.b16 %v1030, %v1026
        %v1127 = vpack.c.b16 %v1031, %v1027
        %v1128 = vpack.c.b16 %v1032, %v1028
        %v1129 = vpack.c.b16 %v1033, %v1029
        %v1130 = vpack.c.b16 %v1038, %v1034
        %v1131 = vpack.c.b16 %v1039, %v1035
        %v1132 = vpack.c.b16 %v1040, %v1036
        %v1133 = vpack.c.b16 %v1041, %v1037
        %v1134 = vpack.c.b16 %v1046, %v1042
        %v1135 = vpack.c.b16 %v1047, %v1043
        %v1136 = vpack.c.b16 %v1048, %v1044
        %v1137 = vpack.c.b16 %v1049, %v1045
        %v1138 = vpack.c.b16 %v1054, %v1050
        %v1139 = vpack.c.b16 %v1055, %v1051
        %v1140 = vpack.c.b16 %v1056, %v1052
        %v1141 = vpack.c.b16 %v1057, %v1053
        %v1142 = vpack.c.b16 %v1062, %v1058
        %v1143 = vpack.c.b16 %v1063, %v1059
        %v1144 = vpack.c.b16 %v1064, %v1060
        %v1145 = vpack.c.b16 %v1065, %v1061
        %v1146 = vpack.c.b16 %v1070, %v1066
        %v1147 = vpack.c.b16 %v1071, %v1067
        %v1148 = vpack.c.b16 %v1072, %v1068
        %v1149 = vpack.c.b16 %v1073, %v1069
        %v1150 = vpack.c.b16 %v1078, %v1074
        %v1151 = vpack.c.b16 %v1079, %v1075
        %v1152 = vpack.c.b16 %v1080, %v1076
        %v1153 = vpack.c.b16 %v1081, %v1077
        %v1154 = vpack.c.b16 %v1086, %v1082
        %v1155 = vpack.c.b16 %v1087, %v1083
        %v1156 = vpack.c.b16 %v1088, %v1084
        %v1157 = vpack.c.b16 %v1089, %v1085
        %v1158 = vpack.c.b16 %v1094, %v1090
        %v1159 = vpack.c.b16 %v1095, %v1091
        %v1160 = vpack.c.b16 %v1096, %v1092
        %v1161 = vpack.c.b16 %v1097, %v1093
        %1226 = vmatprep.subr.bf16.mxu0 0
        %1227 = vmatpush1.bf16.msra.mxu0 %v867
        %1228 = vmatprep.subr.bf16.mxu0 0
        %1229 = vmatpush1.bf16.msra.mxu0 %v868
        %1230 = vmatprep.subr.bf16.mxu0 0
        %1231 = vmatpush1.bf16.msra.mxu0 %v869
        %1232 = vmatprep.subr.bf16.mxu0 0
        %1233 = vmatpush1.bf16.msra.mxu0 %v870
        %1234 = vmatprep.subr.bf16.mxu0 0
        %1235 = vmatpush1.bf16.msra.mxu0 %v871
        %1236 = vmatprep.subr.bf16.mxu0 0
        %1237 = vmatpush1.bf16.msra.mxu0 %v872
        %1238 = vmatprep.subr.bf16.mxu0 0
        %1239 = vmatpush1.bf16.msra.mxu0 %v873
        %1240 = vmatprep.subr.bf16.mxu0 0
        %1241 = vmatpush1.bf16.msra.mxu0 %v874
        %1242 = vmatprep.subr.bf16.mxu0 0
        %1243 = vmatpush1.bf16.msra.mxu0 %v875
        %1244 = vmatprep.subr.bf16.mxu0 0
        %1245 = vmatpush1.bf16.msra.mxu0 %v876
        %1246 = vmatprep.subr.bf16.mxu0 0
        %1247 = vmatpush1.bf16.msra.mxu0 %v877
        %1248 = vmatprep.subr.bf16.mxu0 0
        %1249 = vmatpush1.bf16.msra.mxu0 %v878
        %1250 = vmatprep.subr.bf16.mxu0 0
        %1251 = vmatpush1.bf16.msra.mxu0 %v879
        %1252 = vmatprep.subr.bf16.mxu0 0
        %1253 = vmatpush1.bf16.msra.mxu0 %v880
        %1254 = vmatprep.subr.bf16.mxu0 0
        %1255 = vmatpush1.bf16.msra.mxu0 %v881
        %1256 = vmatprep.subr.bf16.mxu0 0
        %1257 = vmatpush1.bf16.msra.mxu0 %v882
        %1258 = vmatprep.mubr.bf16.mxu0 %v1099
        %1259 = vmatmul.mubr.bf16.gmra.mrb[0].mxu0 %v1098
        %v1260 = vpop.f32.mrb[0].mxu0
        %v1261 = vadd.f32 %v904, %v1260
        %v1262 = vpop.f32.mrb[0].mxu0
        %v1263 = vpop.f32.mrb[0].mxu0
        %v1264 = vadd.f32 %v904, %v1263
        %v1265 = vpop.f32.mrb[0].mxu0
        %1266 = vmatprep.mubr.bf16.mxu0 %v1103
        %1267 = vmatmul.mubr.bf16.gmra.mrb[0].mxu0 %v1102
        %v1268 = vpop.f32.mrb[0].mxu0
        %v1269 = vadd.f32 %v904, %v1268
        %v1270 = vpop.f32.mrb[0].mxu0
        %v1271 = vpop.f32.mrb[0].mxu0
        %v1272 = vadd.f32 %v904, %v1271
        %v1273 = vpop.f32.mrb[0].mxu0
        %1274 = vmatprep.mubr.bf16.mxu0 %v1107
        %1275 = vmatmul.mubr.bf16.gmra.mrb[0].mxu0 %v1106
        %v1276 = vpop.f32.mrb[0].mxu0
        %v1277 = vadd.f32 %v904, %v1276
        %v1278 = vpop.f32.mrb[0].mxu0
        %v1279 = vpop.f32.mrb[0].mxu0
        %v1280 = vadd.f32 %v904, %v1279
        %v1281 = vpop.f32.mrb[0].mxu0
        %1282 = vmatprep.mubr.bf16.mxu0 %v1111
        %1283 = vmatmul.mubr.bf16.gmra.mrb[0].mxu0 %v1110
        %v1284 = vpop.f32.mrb[0].mxu0
        %v1285 = vadd.f32 %v904, %v1284
        %v1286 = vpop.f32.mrb[0].mxu0
        %v1287 = vpop.f32.mrb[0].mxu0
        %v1288 = vadd.f32 %v904, %v1287
        %v1289 = vpop.f32.mrb[0].mxu0
        %1290 = vmatprep.mubr.bf16.mxu0 %v1115
        %1291 = vmatmul.mubr.bf16.gmra.mrb[0].mxu0 %v1114
        %v1292 = vpop.f32.mrb[0].mxu0
        %v1293 = vadd.f32 %v904, %v1292
        %v1294 = vpop.f32.mrb[0].mxu0
        %v1295 = vpop.f32.mrb[0].mxu0
        %v1296 = vadd.f32 %v904, %v1295
        %v1297 = vpop.f32.mrb[0].mxu0
        %1298 = vmatprep.mubr.bf16.mxu0 %v1119
        %1299 = vmatmul.mubr.bf16.gmra.mrb[0].mxu0 %v1118
        %v1300 = vpop.f32.mrb[0].mxu0
        %v1301 = vadd.f32 %v904, %v1300
        %v1302 = vpop.f32.mrb[0].mxu0
        %v1303 = vpop.f32.mrb[0].mxu0
        %v1304 = vadd.f32 %v904, %v1303
        %v1305 = vpop.f32.mrb[0].mxu0
        %1306 = vmatprep.mubr.bf16.mxu0 %v1123
        %1307 = vmatmul.mubr.bf16.gmra.mrb[0].mxu0 %v1122
        %v1308 = vpop.f32.mrb[0].mxu0
        %v1309 = vadd.f32 %v904, %v1308
        %v1310 = vpop.f32.mrb[0].mxu0
        %v1311 = vpop.f32.mrb[0].mxu0
        %v1312 = vadd.f32 %v904, %v1311
        %v1313 = vpop.f32.mrb[0].mxu0
        %1314 = vmatprep.mubr.bf16.mxu0 %v1127
        %1315 = vmatmul.mubr.bf16.gmra.mrb[0].mxu0 %v1126
        %v1316 = vpop.f32.mrb[0].mxu0
        %v1317 = vadd.f32 %v904, %v1316
        %v1318 = vpop.f32.mrb[0].mxu0
        %v1319 = vpop.f32.mrb[0].mxu0
        %v1320 = vadd.f32 %v904, %v1319
        %v1321 = vpop.f32.mrb[0].mxu0
        %1322 = vmatprep.mubr.bf16.mxu0 %v1131
        %1323 = vmatmul.mubr.bf16.gmra.mrb[0].mxu0 %v1130
        %v1324 = vpop.f32.mrb[0].mxu0
        %v1325 = vadd.f32 %v904, %v1324
        %v1326 = vpop.f32.mrb[0].mxu0
        %v1327 = vpop.f32.mrb[0].mxu0
        %v1328 = vadd.f32 %v904, %v1327
        %v1329 = vpop.f32.mrb[0].mxu0
        %1330 = vmatprep.mubr.bf16.mxu0 %v1135
        %1331 = vmatmul.mubr.bf16.gmra.mrb[0].mxu0 %v1134
        %v1332 = vpop.f32.mrb[0].mxu0
        %v1333 = vadd.f32 %v904, %v1332
        %v1334 = vpop.f32.mrb[0].mxu0
        %v1335 = vpop.f32.mrb[0].mxu0
        %v1336 = vadd.f32 %v904, %v1335
        %v1337 = vpop.f32.mrb[0].mxu0
        %1338 = vmatprep.mubr.bf16.mxu0 %v1139
        %1339 = vmatmul.mubr.bf16.gmra.mrb[0].mxu0 %v1138
        %v1340 = vpop.f32.mrb[0].mxu0
        %v1341 = vadd.f32 %v904, %v1340
        %v1342 = vpop.f32.mrb[0].mxu0
        %v1343 = vpop.f32.mrb[0].mxu0
        %v1344 = vadd.f32 %v904, %v1343
        %v1345 = vpop.f32.mrb[0].mxu0
        %1346 = vmatprep.mubr.bf16.mxu0 %v1143
        %1347 = vmatmul.mubr.bf16.gmra.mrb[0].mxu0 %v1142
        %v1348 = vpop.f32.mrb[0].mxu0
        %v1349 = vadd.f32 %v904, %v1348
        %v1350 = vpop.f32.mrb[0].mxu0
        %v1351 = vpop.f32.mrb[0].mxu0
        %v1352 = vadd.f32 %v904, %v1351
        %v1353 = vpop.f32.mrb[0].mxu0
        %1354 = vmatprep.mubr.bf16.mxu0 %v1147
        %1355 = vmatmul.mubr.bf16.gmra.mrb[0].mxu0 %v1146
        %v1356 = vpop.f32.mrb[0].mxu0
        %v1357 = vadd.f32 %v904, %v1356
        %v1358 = vpop.f32.mrb[0].mxu0
        %v1359 = vpop.f32.mrb[0].mxu0
        %v1360 = vadd.f32 %v904, %v1359
        %v1361 = vpop.f32.mrb[0].mxu0
        %1362 = vmatprep.mubr.bf16.mxu0 %v1151
        %1363 = vmatmul.mubr.bf16.gmra.mrb[0].mxu0 %v1150
        %v1364 = vpop.f32.mrb[0].mxu0
        %v1365 = vadd.f32 %v904, %v1364
        %v1366 = vpop.f32.mrb[0].mxu0
        %v1367 = vpop.f32.mrb[0].mxu0
        %v1368 = vadd.f32 %v904, %v1367
        %v1369 = vpop.f32.mrb[0].mxu0
        %1370 = vmatprep.mubr.bf16.mxu0 %v1155
        %1371 = vmatmul.mubr.bf16.gmra.mrb[0].mxu0 %v1154
        %v1372 = vpop.f32.mrb[0].mxu0
        %v1373 = vadd.f32 %v904, %v1372
        %v1374 = vpop.f32.mrb[0].mxu0
        %v1375 = vpop.f32.mrb[0].mxu0
        %v1376 = vadd.f32 %v904, %v1375
        %v1377 = vpop.f32.mrb[0].mxu0
        %1378 = vmatprep.mubr.bf16.mxu0 %v1159
        %1379 = vmatmul.mubr.bf16.gmra.mrb[0].mxu0 %v1158
        %v1380 = vpop.f32.mrb[0].mxu0
        %v1381 = vadd.f32 %v904, %v1380
        %v1382 = vpop.f32.mrb[0].mxu0
        %v1383 = vpop.f32.mrb[0].mxu0
        %v1384 = vadd.f32 %v904, %v1383
        %v1385 = vpop.f32.mrb[0].mxu0
        %1386 = vdwg.mxu0
        %1387 = vmatprep.subr.bf16.mxu0 0
        %1388 = vmatpush1.bf16.msra.mxu0 %v883
        %1389 = vmatprep.subr.bf16.mxu0 0
        %1390 = vmatpush1.bf16.msra.mxu0 %v884
        %1391 = vmatprep.subr.bf16.mxu0 0
        %1392 = vmatpush1.bf16.msra.mxu0 %v885
        %1393 = vmatprep.subr.bf16.mxu0 0
        %1394 = vmatpush1.bf16.msra.mxu0 %v886
        %1395 = vmatprep.subr.bf16.mxu0 0
        %1396 = vmatpush1.bf16.msra.mxu0 %v887
        %1397 = vmatprep.subr.bf16.mxu0 0
        %1398 = vmatpush1.bf16.msra.mxu0 %v888
        %1399 = vmatprep.subr.bf16.mxu0 0
        %1400 = vmatpush1.bf16.msra.mxu0 %v889
        %1401 = vmatprep.subr.bf16.mxu0 0
        %1402 = vmatpush1.bf16.msra.mxu0 %v890
        %1403 = vmatprep.subr.bf16.mxu0 0
        %1404 = vmatpush1.bf16.msra.mxu0 %v891
        %1405 = vmatprep.subr.bf16.mxu0 0
        %1406 = vmatpush1.bf16.msra.mxu0 %v892
        %1407 = vmatprep.subr.bf16.mxu0 0
        %1408 = vmatpush1.bf16.msra.mxu0 %v893
        %1409 = vmatprep.subr.bf16.mxu0 0
        %1410 = vmatpush1.bf16.msra.mxu0 %v894
        %1411 = vmatprep.subr.bf16.mxu0 0
        %1412 = vmatpush1.bf16.msra.mxu0 %v895
        %1413 = vmatprep.subr.bf16.mxu0 0
        %1414 = vmatpush1.bf16.msra.mxu0 %v896
        %1415 = vmatprep.subr.bf16.mxu0 0
        %1416 = vmatpush1.bf16.msra.mxu0 %v897
        %1417 = vmatprep.subr.bf16.mxu0 0
        %1418 = vmatpush1.bf16.msra.mxu0 %v898
        %1419 = vmatprep.mubr.bf16.mxu0 %v1101
        %1420 = vmatmul.mubr.bf16.gmra.mrb[0].mxu0 %v1100
        %v1421 = vpop.f32.mrb[0].mxu0
        %v1422 = vadd.f32 %v1261, %v1421
        %v1423 = vpop.f32.mrb[0].mxu0
        %v1424 = vpop.f32.mrb[0].mxu0
        %v1425 = vadd.f32 %v1264, %v1424
        %v1426 = vpop.f32.mrb[0].mxu0
        %1427 = vmatprep.mubr.bf16.mxu0 %v1105
        %1428 = vmatmul.mubr.bf16.gmra.mrb[0].mxu0 %v1104
        %v1429 = vpop.f32.mrb[0].mxu0
        %v1430 = vadd.f32 %v1269, %v1429
        %v1431 = vpop.f32.mrb[0].mxu0
        %v1432 = vpop.f32.mrb[0].mxu0
        %v1433 = vadd.f32 %v1272, %v1432
        %v1434 = vpop.f32.mrb[0].mxu0
        %1435 = vmatprep.mubr.bf16.mxu0 %v1109
        %1436 = vmatmul.mubr.bf16.gmra.mrb[0].mxu0 %v1108
        %v1437 = vpop.f32.mrb[0].mxu0
        %v1438 = vadd.f32 %v1277, %v1437
        %v1439 = vpop.f32.mrb[0].mxu0
        %v1440 = vpop.f32.mrb[0].mxu0
        %v1441 = vadd.f32 %v1280, %v1440
        %v1442 = vpop.f32.mrb[0].mxu0
        %1443 = vmatprep.mubr.bf16.mxu0 %v1113
        %1444 = vmatmul.mubr.bf16.gmra.mrb[0].mxu0 %v1112
        %v1445 = vpop.f32.mrb[0].mxu0
        %v1446 = vadd.f32 %v1285, %v1445
        %v1447 = vpop.f32.mrb[0].mxu0
        %v1448 = vpop.f32.mrb[0].mxu0
        %v1449 = vadd.f32 %v1288, %v1448
        %v1450 = vpop.f32.mrb[0].mxu0
        %1451 = vmatprep.mubr.bf16.mxu0 %v1117
        %1452 = vmatmul.mubr.bf16.gmra.mrb[0].mxu0 %v1116
        %v1453 = vpop.f32.mrb[0].mxu0
        %v1454 = vadd.f32 %v1293, %v1453
        %v1455 = vpop.f32.mrb[0].mxu0
        %v1456 = vpop.f32.mrb[0].mxu0
        %v1457 = vadd.f32 %v1296, %v1456
        %v1458 = vpop.f32.mrb[0].mxu0
        %1459 = vmatprep.mubr.bf16.mxu0 %v1121
        %1460 = vmatmul.mubr.bf16.gmra.mrb[0].mxu0 %v1120
        %v1461 = vpop.f32.mrb[0].mxu0
        %v1462 = vadd.f32 %v1301, %v1461
        %v1463 = vpop.f32.mrb[0].mxu0
        %v1464 = vpop.f32.mrb[0].mxu0
        %v1465 = vadd.f32 %v1304, %v1464
        %v1466 = vpop.f32.mrb[0].mxu0
        %1467 = vmatprep.mubr.bf16.mxu0 %v1125
        %1468 = vmatmul.mubr.bf16.gmra.mrb[0].mxu0 %v1124
        %v1469 = vpop.f32.mrb[0].mxu0
        %v1470 = vadd.f32 %v1309, %v1469
        %v1471 = vpop.f32.mrb[0].mxu0
        %v1472 = vpop.f32.mrb[0].mxu0
        %v1473 = vadd.f32 %v1312, %v1472
        %v1474 = vpop.f32.mrb[0].mxu0
        %1475 = vmatprep.mubr.bf16.mxu0 %v1129
        %1476 = vmatmul.mubr.bf16.gmra.mrb[0].mxu0 %v1128
        %v1477 = vpop.f32.mrb[0].mxu0
        %v1478 = vadd.f32 %v1317, %v1477
        %v1479 = vpop.f32.mrb[0].mxu0
        %v1480 = vpop.f32.mrb[0].mxu0
        %v1481 = vadd.f32 %v1320, %v1480
        %v1482 = vpop.f32.mrb[0].mxu0
        %1483 = vmatprep.mubr.bf16.mxu0 %v1133
        %1484 = vmatmul.mubr.bf16.gmra.mrb[0].mxu0 %v1132
        %v1485 = vpop.f32.mrb[0].mxu0
        %v1486 = vadd.f32 %v1325, %v1485
        %v1487 = vpop.f32.mrb[0].mxu0
        %v1488 = vpop.f32.mrb[0].mxu0
        %v1489 = vadd.f32 %v1328, %v1488
        %v1490 = vpop.f32.mrb[0].mxu0
        %1491 = vmatprep.mubr.bf16.mxu0 %v1137
        %1492 = vmatmul.mubr.bf16.gmra.mrb[0].mxu0 %v1136
        %v1493 = vpop.f32.mrb[0].mxu0
        %v1494 = vadd.f32 %v1333, %v1493
        %v1495 = vpop.f32.mrb[0].mxu0
        %v1496 = vpop.f32.mrb[0].mxu0
        %v1497 = vadd.f32 %v1336, %v1496
        %v1498 = vpop.f32.mrb[0].mxu0
        %1499 = vmatprep.mubr.bf16.mxu0 %v1141
        %1500 = vmatmul.mubr.bf16.gmra.mrb[0].mxu0 %v1140
        %v1501 = vpop.f32.mrb[0].mxu0
        %v1502 = vadd.f32 %v1341, %v1501
        %v1503 = vpop.f32.mrb[0].mxu0
        %v1504 = vpop.f32.mrb[0].mxu0
        %v1505 = vadd.f32 %v1344, %v1504
        %v1506 = vpop.f32.mrb[0].mxu0
        %1507 = vmatprep.mubr.bf16.mxu0 %v1145
        %1508 = vmatmul.mubr.bf16.gmra.mrb[0].mxu0 %v1144
        %v1509 = vpop.f32.mrb[0].mxu0
        %v1510 = vadd.f32 %v1349, %v1509
        %v1511 = vpop.f32.mrb[0].mxu0
        %v1512 = vpop.f32.mrb[0].mxu0
        %v1513 = vadd.f32 %v1352, %v1512
        %v1514 = vpop.f32.mrb[0].mxu0
        %1515 = vmatprep.mubr.bf16.mxu0 %v1149
        %1516 = vmatmul.mubr.bf16.gmra.mrb[0].mxu0 %v1148
        %v1517 = vpop.f32.mrb[0].mxu0
        %v1518 = vadd.f32 %v1357, %v1517
        %v1519 = vpop.f32.mrb[0].mxu0
        %v1520 = vpop.f32.mrb[0].mxu0
        %v1521 = vadd.f32 %v1360, %v1520
        %v1522 = vpop.f32.mrb[0].mxu0
        %1523 = vmatprep.mubr.bf16.mxu0 %v1153
        %1524 = vmatmul.mubr.bf16.gmra.mrb[0].mxu0 %v1152
        %v1525 = vpop.f32.mrb[0].mxu0
        %v1526 = vadd.f32 %v1365, %v1525
        %v1527 = vpop.f32.mrb[0].mxu0
        %v1528 = vpop.f32.mrb[0].mxu0
        %v1529 = vadd.f32 %v1368, %v1528
        %v1530 = vpop.f32.mrb[0].mxu0
        %1531 = vmatprep.mubr.bf16.mxu0 %v1157
        %1532 = vmatmul.mubr.bf16.gmra.mrb[0].mxu0 %v1156
        %v1533 = vpop.f32.mrb[0].mxu0
        %v1534 = vadd.f32 %v1373, %v1533
        %v1535 = vpop.f32.mrb[0].mxu0
        %v1536 = vpop.f32.mrb[0].mxu0
        %v1537 = vadd.f32 %v1376, %v1536
        %v1538 = vpop.f32.mrb[0].mxu0
        %1539 = vmatprep.mubr.bf16.mxu0 %v1161
        %1540 = vmatmul.mubr.bf16.gmra.mrb[0].mxu0 %v1160
        %v1541 = vpop.f32.mrb[0].mxu0
        %v1542 = vadd.f32 %v1381, %v1541
        %v1543 = vpop.f32.mrb[0].mxu0
        %v1544 = vpop.f32.mrb[0].mxu0
        %v1545 = vadd.f32 %v1384, %v1544
        %v1546 = vpop.f32.mrb[0].mxu0
        %1547 = vdwg.mxu0
        %s1548 = smul.u32 %s29, 256
        // Predicated region
        $region53: #{tpu_custom_call.1} parent=31 // pred_check
          %p1549 = pneg %p266
        $region54: #{tpu_custom_call.1} parent=31 // pred_check_branch
          %1551 = sbr.rel (%p1549) target = $region56
        $region55: #{tpu_custom_call.1} parent=31 // pred_region
          %v1552 = vmax.f32 %v1422, 0.0
          %v1553 = vmax.f32 %v1425, 0.0
          %v1554 = vmax.f32 %v1430, 0.0
          %v1555 = vmax.f32 %v1433, 0.0
          %v1556 = vmax.f32 %v1438, 0.0
          %v1557 = vmax.f32 %v1441, 0.0
          %v1558 = vmax.f32 %v1446, 0.0
          %v1559 = vmax.f32 %v1449, 0.0
          %v1560 = vmax.f32 %v1454, 0.0
          %v1561 = vmax.f32 %v1457, 0.0
          %v1562 = vmax.f32 %v1462, 0.0
          %v1563 = vmax.f32 %v1465, 0.0
          %v1564 = vmax.f32 %v1470, 0.0
          %v1565 = vmax.f32 %v1473, 0.0
          %v1566 = vmax.f32 %v1478, 0.0
          %v1567 = vmax.f32 %v1481, 0.0
          %v1568 = vmax.f32 %v1486, 0.0
          %v1569 = vmax.f32 %v1489, 0.0
          %v1570 = vmax.f32 %v1494, 0.0
          %v1571 = vmax.f32 %v1497, 0.0
          %v1572 = vmax.f32 %v1502, 0.0
          %v1573 = vmax.f32 %v1505, 0.0
          %v1574 = vmax.f32 %v1510, 0.0
          %v1575 = vmax.f32 %v1513, 0.0
          %v1576 = vmax.f32 %v1518, 0.0
          %v1577 = vmax.f32 %v1521, 0.0
          %v1578 = vmax.f32 %v1526, 0.0
          %v1579 = vmax.f32 %v1529, 0.0
          %v1580 = vmax.f32 %v1534, 0.0
          %v1581 = vmax.f32 %v1537, 0.0
          %v1582 = vmax.f32 %v1542, 0.0
          %v1583 = vmax.f32 %v1545, 0.0
          %s1584 = scalar_lea.vmem [#allocation2], %s1548
          %1585 = vst [vmem:[%s1584] sm:$0xff] %v1552
          %1586 = vst [vmem:[%s1584 + $0x8] sm:$0xff] %v1553
          %1587 = vst [vmem:[%s1584 + $0x10] sm:$0xff] %v1554
          %1588 = vst [vmem:[%s1584 + $0x18] sm:$0xff] %v1555
          %1589 = vst [vmem:[%s1584 + $0x20] sm:$0xff] %v1556
          %1590 = vst [vmem:[%s1584 + $0x28] sm:$0xff] %v1557
          %1591 = vst [vmem:[%s1584 + $0x30] sm:$0xff] %v1558
          %1592 = vst [vmem:[%s1584 + $0x38] sm:$0xff] %v1559
          %1593 = vst [vmem:[%s1584 + $0x40] sm:$0xff] %v1560
          %1594 = vst [vmem:[%s1584 + $0x48] sm:$0xff] %v1561
          %1595 = vst [vmem:[%s1584 + $0x50] sm:$0xff] %v1562
          %1596 = vst [vmem:[%s1584 + $0x58] sm:$0xff] %v1563
          %1597 = vst [vmem:[%s1584 + $0x60] sm:$0xff] %v1564
          %1598 = vst [vmem:[%s1584 + $0x68] sm:$0xff] %v1565
          %1599 = vst [vmem:[%s1584 + $0x70] sm:$0xff] %v1566
          %1600 = vst [vmem:[%s1584 + $0x78] sm:$0xff] %v1567
          %1601 = vst [vmem:[%s1584 + $0x80] sm:$0xff] %v1568
          %1602 = vst [vmem:[%s1584 + $0x88] sm:$0xff] %v1569
          %1603 = vst [vmem:[%s1584 + $0x90] sm:$0xff] %v1570
          %1604 = vst [vmem:[%s1584 + $0x98] sm:$0xff] %v1571
          %1605 = vst [vmem:[%s1584 + $0xa0] sm:$0xff] %v1572
          %1606 = vst [vmem:[%s1584 + $0xa8] sm:$0xff] %v1573
          %1607 = vst [vmem:[%s1584 + $0xb0] sm:$0xff] %v1574
          %1608 = vst [vmem:[%s1584 + $0xb8] sm:$0xff] %v1575
          %1609 = vst [vmem:[%s1584 + $0xc0] sm:$0xff] %v1576
          %1610 = vst [vmem:[%s1584 + $0xc8] sm:$0xff] %v1577
          %1611 = vst [vmem:[%s1584 + $0xd0] sm:$0xff] %v1578
          %1612 = vst [vmem:[%s1584 + $0xd8] sm:$0xff] %v1579
          %1613 = vst [vmem:[%s1584 + $0xe0] sm:$0xff] %v1580
          %1614 = vst [vmem:[%s1584 + $0xe8] sm:$0xff] %v1581
          %1615 = vst [vmem:[%s1584 + $0xf0] sm:$0xff] %v1582
          %1616 = vst [vmem:[%s1584 + $0xf8] sm:$0xff] %v1583
        $region56: #{tpu_custom_call.1} parent=31 // pred_fallthru
          _
        %p1617 = scmp.gt.s32.totalorder %s28, 0
        %p1618 = scmp.ne.s32.totalorder %s28, 3
        %p1619 = pnand %p1617, %p1618
        %p1620 = pneg %p1619
        // Predicated region
        $region57: #{tpu_custom_call.1} parent=31 // pred_check
          _
        $region58: #{tpu_custom_call.1} parent=31 // pred_check_branch
          %1622 = sbr.rel (%p1619) target = $region60
        $region59: #{tpu_custom_call.1} parent=31 // pred_region
          %s1623 = scalar_lea.vmem [#allocation2], %s1548
          %v1624 = vld [vmem:[%s1623] sm:$0xff]
          %v1625 = vld [vmem:[%s1623 + $0x8] sm:$0xff]
          %v1626 = vld [vmem:[%s1623 + $0x10] sm:$0xff]
          %v1627 = vld [vmem:[%s1623 + $0x18] sm:$0xff]
          %v1628 = vld [vmem:[%s1623 + $0x20] sm:$0xff]
          %v1629 = vld [vmem:[%s1623 + $0x28] sm:$0xff]
          %v1630 = vld [vmem:[%s1623 + $0x30] sm:$0xff]
          %v1631 = vld [vmem:[%s1623 + $0x38] sm:$0xff]
          %v1632 = vld [vmem:[%s1623 + $0x40] sm:$0xff]
          %v1633 = vld [vmem:[%s1623 + $0x48] sm:$0xff]
          %v1634 = vld [vmem:[%s1623 + $0x50] sm:$0xff]
          %v1635 = vld [vmem:[%s1623 + $0x58] sm:$0xff]
          %v1636 = vld [vmem:[%s1623 + $0x60] sm:$0xff]
          %v1637 = vld [vmem:[%s1623 + $0x68] sm:$0xff]
          %v1638 = vld [vmem:[%s1623 + $0x70] sm:$0xff]
          %v1639 = vld [vmem:[%s1623 + $0x78] sm:$0xff]
          %v1640 = vld [vmem:[%s1623 + $0x80] sm:$0xff]
          %v1641 = vld [vmem:[%s1623 + $0x88] sm:$0xff]
          %v1642 = vld [vmem:[%s1623 + $0x90] sm:$0xff]
          %v1643 = vld [vmem:[%s1623 + $0x98] sm:$0xff]
          %v1644 = vld [vmem:[%s1623 + $0xa0] sm:$0xff]
          %v1645 = vld [vmem:[%s1623 + $0xa8] sm:$0xff]
          %v1646 = vld [vmem:[%s1623 + $0xb0] sm:$0xff]
          %v1647 = vld [vmem:[%s1623 + $0xb8] sm:$0xff]
          %v1648 = vld [vmem:[%s1623 + $0xc0] sm:$0xff]
          %v1649 = vld [vmem:[%s1623 + $0xc8] sm:$0xff]
          %v1650 = vld [vmem:[%s1623 + $0xd0] sm:$0xff]
          %v1651 = vld [vmem:[%s1623 + $0xd8] sm:$0xff]
          %v1652 = vld [vmem:[%s1623 + $0xe0] sm:$0xff]
          %v1653 = vld [vmem:[%s1623 + $0xe8] sm:$0xff]
          %v1654 = vld [vmem:[%s1623 + $0xf0] sm:$0xff]
          %v1655 = vld [vmem:[%s1623 + $0xf8] sm:$0xff]
          %v1656 = vmax.f32 %v1422, 0.0
          %v1657 = vmax.f32 %v1425, 0.0
          %v1658 = vmax.f32 %v1430, 0.0
          %v1659 = vmax.f32 %v1433, 0.0
          %v1660 = vmax.f32 %v1438, 0.0
          %v1661 = vmax.f32 %v1441, 0.0
          %v1662 = vmax.f32 %v1446, 0.0
          %v1663 = vmax.f32 %v1449, 0.0
          %v1664 = vmax.f32 %v1454, 0.0
          %v1665 = vmax.f32 %v1457, 0.0
          %v1666 = vmax.f32 %v1462, 0.0
          %v1667 = vmax.f32 %v1465, 0.0
          %v1668 = vmax.f32 %v1470, 0.0
          %v1669 = vmax.f32 %v1473, 0.0
          %v1670 = vmax.f32 %v1478, 0.0
          %v1671 = vmax.f32 %v1481, 0.0
          %v1672 = vmax.f32 %v1486, 0.0
          %v1673 = vmax.f32 %v1489, 0.0
          %v1674 = vmax.f32 %v1494, 0.0
          %v1675 = vmax.f32 %v1497, 0.0
          %v1676 = vmax.f32 %v1502, 0.0
          %v1677 = vmax.f32 %v1505, 0.0
          %v1678 = vmax.f32 %v1510, 0.0
          %v1679 = vmax.f32 %v1513, 0.0
          %v1680 = vmax.f32 %v1518, 0.0
          %v1681 = vmax.f32 %v1521, 0.0
          %v1682 = vmax.f32 %v1526, 0.0
          %v1683 = vmax.f32 %v1529, 0.0
          %v1684 = vmax.f32 %v1534, 0.0
          %v1685 = vmax.f32 %v1537, 0.0
          %v1686 = vmax.f32 %v1542, 0.0
          %v1687 = vmax.f32 %v1545, 0.0
          %v1688 = vadd.f32 %v1656, %v1624
          %v1689 = vadd.f32 %v1657, %v1625
          %v1690 = vadd.f32 %v1658, %v1626
          %v1691 = vadd.f32 %v1659, %v1627
          %v1692 = vadd.f32 %v1660, %v1628
          %v1693 = vadd.f32 %v1661, %v1629
          %v1694 = vadd.f32 %v1662, %v1630
          %v1695 = vadd.f32 %v1663, %v1631
          %v1696 = vadd.f32 %v1664, %v1632
          %v1697 = vadd.f32 %v1665, %v1633
          %v1698 = vadd.f32 %v1666, %v1634
          %v1699 = vadd.f32 %v1667, %v1635
          %v1700 = vadd.f32 %v1668, %v1636
          %v1701 = vadd.f32 %v1669, %v1637
          %v1702 = vadd.f32 %v1670, %v1638
          %v1703 = vadd.f32 %v1671, %v1639
          %v1704 = vadd.f32 %v1672, %v1640
          %v1705 = vadd.f32 %v1673, %v1641
          %v1706 = vadd.f32 %v1674, %v1642
          %v1707 = vadd.f32 %v1675, %v1643
          %v1708 = vadd.f32 %v1676, %v1644
          %v1709 = vadd.f32 %v1677, %v1645
          %v1710 = vadd.f32 %v1678, %v1646
          %v1711 = vadd.f32 %v1679, %v1647
          %v1712 = vadd.f32 %v1680, %v1648
          %v1713 = vadd.f32 %v1681, %v1649
          %v1714 = vadd.f32 %v1682, %v1650
          %v1715 = vadd.f32 %v1683, %v1651
          %v1716 = vadd.f32 %v1684, %v1652
          %v1717 = vadd.f32 %v1685, %v1653
          %v1718 = vadd.f32 %v1686, %v1654
          %v1719 = vadd.f32 %v1687, %v1655
          %1720 = vst [vmem:[%s1623] sm:$0xff] %v1688
          %1721 = vst [vmem:[%s1623 + $0x8] sm:$0xff] %v1689
          %1722 = vst [vmem:[%s1623 + $0x10] sm:$0xff] %v1690
          %1723 = vst [vmem:[%s1623 + $0x18] sm:$0xff] %v1691
          %1724 = vst [vmem:[%s1623 + $0x20] sm:$0xff] %v1692
          %1725 = vst [vmem:[%s1623 + $0x28] sm:$0xff] %v1693
          %1726 = vst [vmem:[%s1623 + $0x30] sm:$0xff] %v1694
          %1727 = vst [vmem:[%s1623 + $0x38] sm:$0xff] %v1695
          %1728 = vst [vmem:[%s1623 + $0x40] sm:$0xff] %v1696
          %1729 = vst [vmem:[%s1623 + $0x48] sm:$0xff] %v1697
          %1730 = vst [vmem:[%s1623 + $0x50] sm:$0xff] %v1698
          %1731 = vst [vmem:[%s1623 + $0x58] sm:$0xff] %v1699
          %1732 = vst [vmem:[%s1623 + $0x60] sm:$0xff] %v1700
          %1733 = vst [vmem:[%s1623 + $0x68] sm:$0xff] %v1701
          %1734 = vst [vmem:[%s1623 + $0x70] sm:$0xff] %v1702
          %1735 = vst [vmem:[%s1623 + $0x78] sm:$0xff] %v1703
          %1736 = vst [vmem:[%s1623 + $0x80] sm:$0xff] %v1704
          %1737 = vst [vmem:[%s1623 + $0x88] sm:$0xff] %v1705
          %1738 = vst [vmem:[%s1623 + $0x90] sm:$0xff] %v1706
          %1739 = vst [vmem:[%s1623 + $0x98] sm:$0xff] %v1707
          %1740 = vst [vmem:[%s1623 + $0xa0] sm:$0xff] %v1708
          %1741 = vst [vmem:[%s1623 + $0xa8] sm:$0xff] %v1709
          %1742 = vst [vmem:[%s1623 + $0xb0] sm:$0xff] %v1710
          %1743 = vst [vmem:[%s1623 + $0xb8] sm:$0xff] %v1711
          %1744 = vst [vmem:[%s1623 + $0xc0] sm:$0xff] %v1712
          %1745 = vst [vmem:[%s1623 + $0xc8] sm:$0xff] %v1713
          %1746 = vst [vmem:[%s1623 + $0xd0] sm:$0xff] %v1714
          %1747 = vst [vmem:[%s1623 + $0xd8] sm:$0xff] %v1715
          %1748 = vst [vmem:[%s1623 + $0xe0] sm:$0xff] %v1716
          %1749 = vst [vmem:[%s1623 + $0xe8] sm:$0xff] %v1717
          %1750 = vst [vmem:[%s1623 + $0xf0] sm:$0xff] %v1718
          %1751 = vst [vmem:[%s1623 + $0xf8] sm:$0xff] %v1719
        $region60: #{tpu_custom_call.1} parent=31 // pred_fallthru
          _
        // Predicated region
        $region61: #{tpu_custom_call.1} parent=31 // pred_check
          %p1752 = pneg %p267
        $region62: #{tpu_custom_call.1} parent=31 // pred_check_branch
          %1754 = sbr.rel (%p1752) target = $region64
        $region63: #{tpu_custom_call.1} parent=31 // pred_region
          %v1755 = vlaneseq
          %v1756 = vand.u32 %v1755, 127
          %vm1757 = vcmp.lt.s32.totalorder %v1756, 8
          %v1758 = vsel %vm1757, %v1422, -1e+30
          %v1759 = vsel %vm1757, %v1425, -1e+30
          %v1760 = vsel %vm1757, %v1430, -1e+30
          %v1761 = vsel %vm1757, %v1433, -1e+30
          %v1762 = vsel %vm1757, %v1438, -1e+30
          %v1763 = vsel %vm1757, %v1441, -1e+30
          %v1764 = vsel %vm1757, %v1446, -1e+30
          %v1765 = vsel %vm1757, %v1449, -1e+30
          %v1766 = vsel %vm1757, %v1454, -1e+30
          %v1767 = vsel %vm1757, %v1457, -1e+30
          %v1768 = vsel %vm1757, %v1462, -1e+30
          %v1769 = vsel %vm1757, %v1465, -1e+30
          %v1770 = vsel %vm1757, %v1470, -1e+30
          %v1771 = vsel %vm1757, %v1473, -1e+30
          %v1772 = vsel %vm1757, %v1478, -1e+30
          %v1773 = vsel %vm1757, %v1481, -1e+30
          %v1774 = vsel %vm1757, %v1486, -1e+30
          %v1775 = vsel %vm1757, %v1489, -1e+30
          %v1776 = vsel %vm1757, %v1494, -1e+30
          %v1777 = vsel %vm1757, %v1497, -1e+30
          %v1778 = vsel %vm1757, %v1502, -1e+30
          %v1779 = vsel %vm1757, %v1505, -1e+30
          %v1780 = vsel %vm1757, %v1510, -1e+30
          %v1781 = vsel %vm1757, %v1513, -1e+30
          %v1782 = vsel %vm1757, %v1518, -1e+30
          %v1783 = vsel %vm1757, %v1521, -1e+30
          %v1784 = vsel %vm1757, %v1526, -1e+30
          %v1785 = vsel %vm1757, %v1529, -1e+30
          %v1786 = vsel %vm1757, %v1534, -1e+30
          %v1787 = vsel %vm1757, %v1537, -1e+30
          %v1788 = vsel %vm1757, %v1542, -1e+30
          %v1789 = vsel %vm1757, %v1545, -1e+30
          %1790 = vmax.xlane.f32.xlu0 %v1758
          %v1791 = vpop.xlane.xlu0 %1790
          %1792 = vmax.xlane.f32.xlu0 %v1759
          %v1793 = vpop.xlane.xlu0 %1792
          %1794 = vmax.xlane.f32.xlu0 %v1760
          %v1795 = vpop.xlane.xlu0 %1794
          %1796 = vmax.xlane.f32.xlu0 %v1761
          %v1797 = vpop.xlane.xlu0 %1796
          %1798 = vmax.xlane.f32.xlu0 %v1762
          %v1799 = vpop.xlane.xlu0 %1798
          %1800 = vmax.xlane.f32.xlu0 %v1763
          %v1801 = vpop.xlane.xlu0 %1800
          %1802 = vmax.xlane.f32.xlu0 %v1764
          %v1803 = vpop.xlane.xlu0 %1802
          %1804 = vmax.xlane.f32.xlu0 %v1765
          %v1805 = vpop.xlane.xlu0 %1804
          %1806 = vmax.xlane.f32.xlu0 %v1766
          %v1807 = vpop.xlane.xlu0 %1806
          %1808 = vmax.xlane.f32.xlu0 %v1767
          %v1809 = vpop.xlane.xlu0 %1808
          %1810 = vmax.xlane.f32.xlu0 %v1768
          %v1811 = vpop.xlane.xlu0 %1810
          %1812 = vmax.xlane.f32.xlu0 %v1769
          %v1813 = vpop.xlane.xlu0 %1812
          %1814 = vmax.xlane.f32.xlu0 %v1770
          %v1815 = vpop.xlane.xlu0 %1814
          %1816 = vmax.xlane.f32.xlu0 %v1771
          %v1817 = vpop.xlane.xlu0 %1816
          %1818 = vmax.xlane.f32.xlu0 %v1772
          %v1819 = vpop.xlane.xlu0 %1818
          %1820 = vmax.xlane.f32.xlu0 %v1773
          %v1821 = vpop.xlane.xlu0 %1820
          %1822 = vmax.xlane.f32.xlu0 %v1774
          %v1823 = vpop.xlane.xlu0 %1822
          %1824 = vmax.xlane.f32.xlu0 %v1775
          %v1825 = vpop.xlane.xlu0 %1824
          %1826 = vmax.xlane.f32.xlu0 %v1776
          %v1827 = vpop.xlane.xlu0 %1826
          %1828 = vmax.xlane.f32.xlu0 %v1777
          %v1829 = vpop.xlane.xlu0 %1828
          %1830 = vmax.xlane.f32.xlu0 %v1778
          %v1831 = vpop.xlane.xlu0 %1830
          %1832 = vmax.xlane.f32.xlu0 %v1779
          %v1833 = vpop.xlane.xlu0 %1832
          %1834 = vmax.xlane.f32.xlu0 %v1780
          %v1835 = vpop.xlane.xlu0 %1834
          %1836 = vmax.xlane.f32.xlu0 %v1781
          %v1837 = vpop.xlane.xlu0 %1836
          %1838 = vmax.xlane.f32.xlu0 %v1782
          %v1839 = vpop.xlane.xlu0 %1838
          %1840 = vmax.xlane.f32.xlu0 %v1783
          %v1841 = vpop.xlane.xlu0 %1840
          %1842 = vmax.xlane.f32.xlu0 %v1784
          %v1843 = vpop.xlane.xlu0 %1842
          %1844 = vmax.xlane.f32.xlu0 %v1785
          %v1845 = vpop.xlane.xlu0 %1844
          %1846 = vmax.xlane.f32.xlu0 %v1786
          %v1847 = vpop.xlane.xlu0 %1846
          %1848 = vmax.xlane.f32.xlu0 %v1787
          %v1849 = vpop.xlane.xlu0 %1848
          %1850 = vmax.xlane.f32.xlu0 %v1788
          %v1851 = vpop.xlane.xlu0 %1850
          %1852 = vmax.xlane.f32.xlu0 %v1789
          %v1853 = vpop.xlane.xlu0 %1852
          %v1854 = vsub.f32 %v1758, %v1791
          %v1855 = vsub.f32 %v1759, %v1793
          %v1856 = vsub.f32 %v1760, %v1795
          %v1857 = vsub.f32 %v1761, %v1797
          %v1858 = vsub.f32 %v1762, %v1799
          %v1859 = vsub.f32 %v1763, %v1801
          %v1860 = vsub.f32 %v1764, %v1803
          %v1861 = vsub.f32 %v1765, %v1805
          %v1862 = vsub.f32 %v1766, %v1807
          %v1863 = vsub.f32 %v1767, %v1809
          %v1864 = vsub.f32 %v1768, %v1811
          %v1865 = vsub.f32 %v1769, %v1813
          %v1866 = vsub.f32 %v1770, %v1815
          %v1867 = vsub.f32 %v1771, %v1817
          %v1868 = vsub.f32 %v1772, %v1819
          %v1869 = vsub.f32 %v1773, %v1821
          %v1870 = vsub.f32 %v1774, %v1823
          %v1871 = vsub.f32 %v1775, %v1825
          %v1872 = vsub.f32 %v1776, %v1827
          %v1873 = vsub.f32 %v1777, %v1829
          %v1874 = vsub.f32 %v1778, %v1831
          %v1875 = vsub.f32 %v1779, %v1833
          %v1876 = vsub.f32 %v1780, %v1835
          %v1877 = vsub.f32 %v1781, %v1837
          %v1878 = vsub.f32 %v1782, %v1839
          %v1879 = vsub.f32 %v1783, %v1841
          %v1880 = vsub.f32 %v1784, %v1843
          %v1881 = vsub.f32 %v1785, %v1845
          %v1882 = vsub.f32 %v1786, %v1847
          %v1883 = vsub.f32 %v1787, %v1849
          %v1884 = vsub.f32 %v1788, %v1851
          %v1885 = vsub.f32 %v1789, %v1853
          %v1886 = vmul.f32 %v1854, 1.442695
          %v1887 = vpow.pop %v1886
          %v1888 = vmul.f32 %v1855, 1.442695
          %v1889 = vpow.pop %v1888
          %v1890 = vmul.f32 %v1856, 1.442695
          %v1891 = vpow.pop %v1890
          %v1892 = vmul.f32 %v1857, 1.442695
          %v1893 = vpow.pop %v1892
          %v1894 = vmul.f32 %v1858, 1.442695
          %v1895 = vpow.pop %v1894
          %v1896 = vmul.f32 %v1859, 1.442695
          %v1897 = vpow.pop %v1896
          %v1898 = vmul.f32 %v1860, 1.442695
          %v1899 = vpow.pop %v1898
          %v1900 = vmul.f32 %v1861, 1.442695
          %v1901 = vpow.pop %v1900
          %v1902 = vmul.f32 %v1862, 1.442695
          %v1903 = vpow.pop %v1902
          %v1904 = vmul.f32 %v1863, 1.442695
          %v1905 = vpow.pop %v1904
          %v1906 = vmul.f32 %v1864, 1.442695
          %v1907 = vpow.pop %v1906
          %v1908 = vmul.f32 %v1865, 1.442695
          %v1909 = vpow.pop %v1908
          %v1910 = vmul.f32 %v1866, 1.442695
          %v1911 = vpow.pop %v1910
          %v1912 = vmul.f32 %v1867, 1.442695
          %v1913 = vpow.pop %v1912
          %v1914 = vmul.f32 %v1868, 1.442695
          %v1915 = vpow.pop %v1914
          %v1916 = vmul.f32 %v1869, 1.442695
          %v1917 = vpow.pop %v1916
          %v1918 = vmul.f32 %v1870, 1.442695
          %v1919 = vpow.pop %v1918
          %v1920 = vmul.f32 %v1871, 1.442695
          %v1921 = vpow.pop %v1920
          %v1922 = vmul.f32 %v1872, 1.442695
          %v1923 = vpow.pop %v1922
          %v1924 = vmul.f32 %v1873, 1.442695
          %v1925 = vpow.pop %v1924
          %v1926 = vmul.f32 %v1874, 1.442695
          %v1927 = vpow.pop %v1926
          %v1928 = vmul.f32 %v1875, 1.442695
          %v1929 = vpow.pop %v1928
          %v1930 = vmul.f32 %v1876, 1.442695
          %v1931 = vpow.pop %v1930
          %v1932 = vmul.f32 %v1877, 1.442695
          %v1933 = vpow.pop %v1932
          %v1934 = vmul.f32 %v1878, 1.442695
          %v1935 = vpow.pop %v1934
          %v1936 = vmul.f32 %v1879, 1.442695
          %v1937 = vpow.pop %v1936
          %v1938 = vmul.f32 %v1880, 1.442695
          %v1939 = vpow.pop %v1938
          %v1940 = vmul.f32 %v1881, 1.442695
          %v1941 = vpow.pop %v1940
          %v1942 = vmul.f32 %v1882, 1.442695
          %v1943 = vpow.pop %v1942
          %v1944 = vmul.f32 %v1883, 1.442695
          %v1945 = vpow.pop %v1944
          %v1946 = vmul.f32 %v1884, 1.442695
          %v1947 = vpow.pop %v1946
          %v1948 = vmul.f32 %v1885, 1.442695
          %v1949 = vpow.pop %v1948
          %1950 = vadd.xlane.f32.xlu0 %v1887
          %v1951 = vpop.xlane.xlu0 %1950
          %1952 = vadd.xlane.f32.xlu0 %v1889
          %v1953 = vpop.xlane.xlu0 %1952
          %1954 = vadd.xlane.f32.xlu0 %v1891
          %v1955 = vpop.xlane.xlu0 %1954
          %1956 = vadd.xlane.f32.xlu0 %v1893
          %v1957 = vpop.xlane.xlu0 %1956
          %1958 = vadd.xlane.f32.xlu0 %v1895
          %v1959 = vpop.xlane.xlu0 %1958
          %1960 = vadd.xlane.f32.xlu0 %v1897
          %v1961 = vpop.xlane.xlu0 %1960
          %1962 = vadd.xlane.f32.xlu0 %v1899
          %v1963 = vpop.xlane.xlu0 %1962
          %1964 = vadd.xlane.f32.xlu0 %v1901
          %v1965 = vpop.xlane.xlu0 %1964
          %1966 = vadd.xlane.f32.xlu0 %v1903
          %v1967 = vpop.xlane.xlu0 %1966
          %1968 = vadd.xlane.f32.xlu0 %v1905
          %v1969 = vpop.xlane.xlu0 %1968
          %1970 = vadd.xlane.f32.xlu0 %v1907
          %v1971 = vpop.xlane.xlu0 %1970
          %1972 = vadd.xlane.f32.xlu0 %v1909
          %v1973 = vpop.xlane.xlu0 %1972
          %1974 = vadd.xlane.f32.xlu0 %v1911
          %v1975 = vpop.xlane.xlu0 %1974
          %1976 = vadd.xlane.f32.xlu0 %v1913
          %v1977 = vpop.xlane.xlu0 %1976
          %1978 = vadd.xlane.f32.xlu0 %v1915
          %v1979 = vpop.xlane.xlu0 %1978
          %1980 = vadd.xlane.f32.xlu0 %v1917
          %v1981 = vpop.xlane.xlu0 %1980
          %1982 = vadd.xlane.f32.xlu0 %v1919
          %v1983 = vpop.xlane.xlu0 %1982
          %1984 = vadd.xlane.f32.xlu0 %v1921
          %v1985 = vpop.xlane.xlu0 %1984
          %1986 = vadd.xlane.f32.xlu0 %v1923
          %v1987 = vpop.xlane.xlu0 %1986
          %1988 = vadd.xlane.f32.xlu0 %v1925
          %v1989 = vpop.xlane.xlu0 %1988
          %1990 = vadd.xlane.f32.xlu0 %v1927
          %v1991 = vpop.xlane.xlu0 %1990
          %1992 = vadd.xlane.f32.xlu0 %v1929
          %v1993 = vpop.xlane.xlu0 %1992
          %1994 = vadd.xlane.f32.xlu0 %v1931
          %v1995 = vpop.xlane.xlu0 %1994
          %1996 = vadd.xlane.f32.xlu0 %v1933
          %v1997 = vpop.xlane.xlu0 %1996
          %1998 = vadd.xlane.f32.xlu0 %v1935
          %v1999 = vpop.xlane.xlu0 %1998
          %2000 = vadd.xlane.f32.xlu0 %v1937
          %v2001 = vpop.xlane.xlu0 %2000
          %2002 = vadd.xlane.f32.xlu0 %v1939
          %v2003 = vpop.xlane.xlu0 %2002
          %2004 = vadd.xlane.f32.xlu0 %v1941
          %v2005 = vpop.xlane.xlu0 %2004
          %2006 = vadd.xlane.f32.xlu0 %v1943
          %v2007 = vpop.xlane.xlu0 %2006
          %2008 = vadd.xlane.f32.xlu0 %v1945
          %v2009 = vpop.xlane.xlu0 %2008
          %2010 = vadd.xlane.f32.xlu0 %v1947
          %v2011 = vpop.xlane.xlu0 %2010
          %2012 = vadd.xlane.f32.xlu0 %v1949
          %v2013 = vpop.xlane.xlu0 %2012
          %v2014 = vlog2.pop %v1951
          %v2015 = vmul.f32 %v2014, 0.6931472
          %v2016 = vlog2.pop %v1953
          %v2017 = vmul.f32 %v2016, 0.6931472
          %v2018 = vlog2.pop %v1955
          %v2019 = vmul.f32 %v2018, 0.6931472
          %v2020 = vlog2.pop %v1957
          %v2021 = vmul.f32 %v2020, 0.6931472
          %v2022 = vlog2.pop %v1959
          %v2023 = vmul.f32 %v2022, 0.6931472
          %v2024 = vlog2.pop %v1961
          %v2025 = vmul.f32 %v2024, 0.6931472
          %v2026 = vlog2.pop %v1963
          %v2027 = vmul.f32 %v2026, 0.6931472
          %v2028 = vlog2.pop %v1965
          %v2029 = vmul.f32 %v2028, 0.6931472
          %v2030 = vlog2.pop %v1967
          %v2031 = vmul.f32 %v2030, 0.6931472
          %v2032 = vlog2.pop %v1969
          %v2033 = vmul.f32 %v2032, 0.6931472
          %v2034 = vlog2.pop %v1971
          %v2035 = vmul.f32 %v2034, 0.6931472
          %v2036 = vlog2.pop %v1973
          %v2037 = vmul.f32 %v2036, 0.6931472
          %v2038 = vlog2.pop %v1975
          %v2039 = vmul.f32 %v2038, 0.6931472
          %v2040 = vlog2.pop %v1977
          %v2041 = vmul.f32 %v2040, 0.6931472
          %v2042 = vlog2.pop %v1979
          %v2043 = vmul.f32 %v2042, 0.6931472
          %v2044 = vlog2.pop %v1981
          %v2045 = vmul.f32 %v2044, 0.6931472
          %v2046 = vlog2.pop %v1983
          %v2047 = vmul.f32 %v2046, 0.6931472
          %v2048 = vlog2.pop %v1985
          %v2049 = vmul.f32 %v2048, 0.6931472
          %v2050 = vlog2.pop %v1987
          %v2051 = vmul.f32 %v2050, 0.6931472
          %v2052 = vlog2.pop %v1989
          %v2053 = vmul.f32 %v2052, 0.6931472
          %v2054 = vlog2.pop %v1991
          %v2055 = vmul.f32 %v2054, 0.6931472
          %v2056 = vlog2.pop %v1993
          %v2057 = vmul.f32 %v2056, 0.6931472
          %v2058 = vlog2.pop %v1995
          %v2059 = vmul.f32 %v2058, 0.6931472
          %v2060 = vlog2.pop %v1997
          %v2061 = vmul.f32 %v2060, 0.6931472
          %v2062 = vlog2.pop %v1999
          %v2063 = vmul.f32 %v2062, 0.6931472
          %v2064 = vlog2.pop %v2001
          %v2065 = vmul.f32 %v2064, 0.6931472
          %v2066 = vlog2.pop %v2003
          %v2067 = vmul.f32 %v2066, 0.6931472
          %v2068 = vlog2.pop %v2005
          %v2069 = vmul.f32 %v2068, 0.6931472
          %v2070 = vlog2.pop %v2007
          %v2071 = vmul.f32 %v2070, 0.6931472
          %v2072 = vlog2.pop %v2009
          %v2073 = vmul.f32 %v2072, 0.6931472
          %v2074 = vlog2.pop %v2011
          %v2075 = vmul.f32 %v2074, 0.6931472
          %v2076 = vlog2.pop %v2013
          %v2077 = vmul.f32 %v2076, 0.6931472
          %v2078 = vsub.f32 %v1854, %v2015
          %v2079 = vsub.f32 %v1855, %v2017
          %v2080 = vsub.f32 %v1856, %v2019
          %v2081 = vsub.f32 %v1857, %v2021
          %v2082 = vsub.f32 %v1858, %v2023
          %v2083 = vsub.f32 %v1859, %v2025
          %v2084 = vsub.f32 %v1860, %v2027
          %v2085 = vsub.f32 %v1861, %v2029
          %v2086 = vsub.f32 %v1862, %v2031
          %v2087 = vsub.f32 %v1863, %v2033
          %v2088 = vsub.f32 %v1864, %v2035
          %v2089 = vsub.f32 %v1865, %v2037
          %v2090 = vsub.f32 %v1866, %v2039
          %v2091 = vsub.f32 %v1867, %v2041
          %v2092 = vsub.f32 %v1868, %v2043
          %v2093 = vsub.f32 %v1869, %v2045
          %v2094 = vsub.f32 %v1870, %v2047
          %v2095 = vsub.f32 %v1871, %v2049
          %v2096 = vsub.f32 %v1872, %v2051
          %v2097 = vsub.f32 %v1873, %v2053
          %v2098 = vsub.f32 %v1874, %v2055
          %v2099 = vsub.f32 %v1875, %v2057
          %v2100 = vsub.f32 %v1876, %v2059
          %v2101 = vsub.f32 %v1877, %v2061
          %v2102 = vsub.f32 %v1878, %v2063
          %v2103 = vsub.f32 %v1879, %v2065
          %v2104 = vsub.f32 %v1880, %v2067
          %v2105 = vsub.f32 %v1881, %v2069
          %v2106 = vsub.f32 %v1882, %v2071
          %v2107 = vsub.f32 %v1883, %v2073
          %v2108 = vsub.f32 %v1884, %v2075
          %v2109 = vsub.f32 %v1885, %v2077
          %2110 = vst [vmem:[%s257] sm:$0xff] %v2078
          %2111 = vst [vmem:[%s257 + $0x8] sm:$0xff] %v2079
          %2112 = vst [vmem:[%s257 + $0x10] sm:$0xff] %v2080
          %2113 = vst [vmem:[%s257 + $0x18] sm:$0xff] %v2081
          %2114 = vst [vmem:[%s257 + $0x20] sm:$0xff] %v2082
          %2115 = vst [vmem:[%s257 + $0x28] sm:$0xff] %v2083
          %2116 = vst [vmem:[%s257 + $0x30] sm:$0xff] %v2084
          %2117 = vst [vmem:[%s257 + $0x38] sm:$0xff] %v2085
          %2118 = vst [vmem:[%s257 + $0x40] sm:$0xff] %v2086
          %2119 = vst [vmem:[%s257 + $0x48] sm:$0xff] %v2087
          %2120 = vst [vmem:[%s257 + $0x50] sm:$0xff] %v2088
          %2121 = vst [vmem:[%s257 + $0x58] sm:$0xff] %v2089
          %2122 = vst [vmem:[%s257 + $0x60] sm:$0xff] %v2090
          %2123 = vst [vmem:[%s257 + $0x68] sm:$0xff] %v2091
          %2124 = vst [vmem:[%s257 + $0x70] sm:$0xff] %v2092
          %2125 = vst [vmem:[%s257 + $0x78] sm:$0xff] %v2093
          %2126 = vst [vmem:[%s257 + $0x80] sm:$0xff] %v2094
          %2127 = vst [vmem:[%s257 + $0x88] sm:$0xff] %v2095
          %2128 = vst [vmem:[%s257 + $0x90] sm:$0xff] %v2096
          %2129 = vst [vmem:[%s257 + $0x98] sm:$0xff] %v2097
          %2130 = vst [vmem:[%s257 + $0xa0] sm:$0xff] %v2098
          %2131 = vst [vmem:[%s257 + $0xa8] sm:$0xff] %v2099
          %2132 = vst [vmem:[%s257 + $0xb0] sm:$0xff] %v2100
          %2133 = vst [vmem:[%s257 + $0xb8] sm:$0xff] %v2101
          %2134 = vst [vmem:[%s257 + $0xc0] sm:$0xff] %v2102
          %2135 = vst [vmem:[%s257 + $0xc8] sm:$0xff] %v2103
          %2136 = vst [vmem:[%s257 + $0xd0] sm:$0xff] %v2104
          %2137 = vst [vmem:[%s257 + $0xd8] sm:$0xff] %v2105
          %2138 = vst [vmem:[%s257 + $0xe0] sm:$0xff] %v2106
          %2139 = vst [vmem:[%s257 + $0xe8] sm:$0xff] %v2107
          %2140 = vst [vmem:[%s257 + $0xf0] sm:$0xff] %v2108
          %2141 = vst [vmem:[%s257 + $0xf8] sm:$0xff] %v2109
        $region64: #{tpu_custom_call.1} parent=31 // pred_fallthru
          _
        %s2142 = sand.u32 %s126, 1
        %s2143 = scalar_lea.sflag [#allocation7], %s2142
        %s2144 = sand.u32 %s126, 1
        %s2145 = smul.addr %s2144, 256
        %s2146 = scalar_lea.vmem [#allocation10], %s2145
        // Predicated region
        $region65: #{tpu_custom_call.1} parent=31 // pred_check
          %p2147 = pneg %p136
        $region66: #{tpu_custom_call.1} parent=31 // pred_check_branch
          %2149 = sbr.rel (%p2147) target = $region68
        $region67: #{tpu_custom_call.1} parent=31 // pred_region
          %p2150 = scmp.eq.s32.totalorder %s28, 3
          %s2151 = scalar_select %p2150, %s29, 0
          %s2152 = smul.u32 32, %s2151
          %s2154 = ssub.s32 4096, 4096
          %2155 = vsyncadd %s2143, %s2154
          %s2156 = smul.addr %s2152, 128
          %s2157 = scalar_lea.hbm %s4, %s2156
          %s2158 = sshll.u32 %s2146, 4
          %s2159 = int_to_ptr.vmem [resolvable:$true] %s2158
          %2164 = dma.vmem_to_hbm [thread:$0]  %s2159, 4096, %s2157, %s2143, 128, 128, 8
        $region68: #{tpu_custom_call.1} parent=31 // pred_fallthru
          _
      $region32: #{tpu_custom_call.1} parent=5 // pred_fallthru
        _
      %p2165 = scmp.le.s32.totalorder 2, %s19
      // Predicated region
      $region69: #{tpu_custom_call.1} parent=5 // pred_check
        %p2166 = pneg %p2165
      $region70: #{tpu_custom_call.1} parent=5 // pred_check_branch
        %2168 = sbr.rel (%p2166) target = $region72
      $region71: #{tpu_custom_call.1} parent=5 // pred_region
        %s2169 = ssub.s32 %s19, 2
        // Predicated region
        $region73: #{tpu_custom_call.1} parent=71 // pred_check
          %p2170 = pneg %p142
        $region74: #{tpu_custom_call.1} parent=71 // pred_check_branch
          %2172 = sbr.rel (%p2170) target = $region76
        $region75: #{tpu_custom_call.1} parent=71 // pred_region
          %s2173 = sand.u32 %s127, 1
          %s2174 = scalar_lea.sflag [#allocation7], %s2173
          %s2175 = sand.u32 %s127, 1
          %s2176 = smul.addr %s2175, 256
          %s2177 = scalar_lea.vmem [#allocation10], %s2176
          %2178 = dma.done %s2174, 4096
        $region76: #{tpu_custom_call.1} parent=71 // pred_fallthru
          _
      $region72: #{tpu_custom_call.1} parent=5 // pred_fallthru
        _
    $region6: #{tpu_custom_call.1} parent=1 // loop_footer
      %s23 = sadd.s32 1, %s19
    $region7: #{tpu_custom_call.1} parent=1 // loop_footer_branch
      %18 = sbr.rel target = $region3
    $region8: #{tpu_custom_call.1} parent=1 // loop_exit
      _
    %2179 = vsyncpa [#allocation6], 1
    %s2180 = scalar_lea.sflag [#allocation6], 1
    %2181 = vsyncpa %s2180, 1
    %2182 = vsyncpa [#allocation9], 1
    %s2183 = scalar_lea.sflag [#allocation9], 1
    %2184 = vsyncpa %s2183, 1
    %2185 = vsyncpa [#allocation7], 1
    %s2186 = scalar_lea.sflag [#allocation7], 1
    %2187 = vsyncpa %s2186, 1
  %2188 = vsyncmov [#allocation4]
  %s2189 = vpop.sfrf %2188
  %p2190 = scmp.eq.s32.totalorder %s2189, 0
  %p2191 = pneg %p2190
  %2193 = shalt.err (%p2191)

</llo_original>
